<compile_context>
chip_gen: v6e
topology: v6e:2x2x1
jax: 0.10.0
libtpu: 0.0.40
codegen_flags: <defaults>
</compile_context>

<pallas_src>
import jax
import jax.numpy as jnp
from jax import lax
from jax.experimental import pallas as pl
from jax.experimental.pallas import tpu as pltpu

_F32 = jnp.float32
_CONTRACT_LAST = (((1,), (1,)), ((), ()))  # contract last dim of both operands


# ----------------------------------------------------------------------------
# Shared tiny-branch math (pooled sums -> sigmoid gates)
# ----------------------------------------------------------------------------
def _hswish(v):
    return v * (jnp.clip(v + 3.0, 0.0, 6.0) * (1.0 / 6.0))


def _gates(xh_sum, xw_sum, x_c,
           w1a, w1b, b1, w2a, w2b, b2, wy1, by1, wy2, by2):
    """xh_sum (c,h) = sum over W, xw_sum (c,w) = sum over H, x_c (h,w).

    1/W, 1/H mean factors, eval-mode BatchNorm and conv biases are folded into
    w1a/w2a/b1/b2 in the wrapper.  Returns a1 (oup,h), a2 (oup,w) in f32.
    """
    y1 = (jnp.dot(w1a, xh_sum, preferred_element_type=_F32)
          + lax.dot_general(w1b, x_c, _CONTRACT_LAST,
                            preferred_element_type=_F32)   # == w1b @ x_c.T
          + b1)
    y1 = _hswish(y1)
    y2 = (jnp.dot(w2a, xw_sum, preferred_element_type=_F32)
          + jnp.dot(w2b, x_c, preferred_element_type=_F32)
          + b2)
    y2 = _hswish(y2)
    a1 = jax.nn.sigmoid(jnp.dot(wy1, y1, preferred_element_type=_F32) + by1)
    a2 = jax.nn.sigmoid(jnp.dot(wy2, y2, preferred_element_type=_F32) + by2)
    return a1, a2


# ----------------------------------------------------------------------------
# Kernel 1: fully-fused single-pass (slab resident in VMEM), lane-dense (c, hw)
# ----------------------------------------------------------------------------
def _resident_kernel(xf_ref, xc_ref, rsel_ref, tsel_ref,
                     w1a_ref, w1b_ref, b1_ref,
                     w2a_ref, w2b_ref, b2_ref,
                     wy1_ref, by1_ref, wy2_ref, by2_ref,
                     out_ref):
    xf = xf_ref[0]                    # (c, hw)  native dtype, lane-dense
    r_sel = rsel_ref[...]             # (h, hw)  0/1, same dtype as xf (resident)
    t_sel = tsel_ref[...]             # (w, hw)

    # Adaptive average pools as MXU matmuls against the hoisted 0/1 matrices.
    xh_sum = lax.dot_general(xf, r_sel, _CONTRACT_LAST,
                             preferred_element_type=_F32)   # (c, h) sum over W
    xw_sum = lax.dot_general(xf, t_sel, _CONTRACT_LAST,
                             preferred_element_type=_F32)   # (c, w) sum over H

    a1, a2 = _gates(xh_sum, xw_sum, xc_ref[0],
                    w1a_ref[...], w1b_ref[...], b1_ref[...],
                    w2a_ref[...], w2b_ref[...], b2_ref[...],
                    wy1_ref[...], by1_ref[...], wy2_ref[...], by2_ref[...])

    # Broadcast gates back onto the flat spatial axis with the same matrices:
    #   gate[k, i*w + j] = a1[k, i] * a2[k, j]
    g1 = jnp.dot(a1.astype(xf.dtype), r_sel, preferred_element_type=_F32)
    g2 = jnp.dot(a2.astype(xf.dtype), t_sel, preferred_element_type=_F32)
    out_ref[0] = (xf.astype(_F32) * g1 * g2).astype(out_ref.dtype)


# ----------------------------------------------------------------------------
# Kernels 2a/2b: tiled two-pass form for slabs that don't fit VMEM
#   pass A: stream (c, th, w) tiles, accumulate pooled sums, emit a1/a2
#   pass B: stream (c, th, w) tiles and apply the gate per tile
# ----------------------------------------------------------------------------
def _pool_kernel(xf_ref, xc_ref,
                 w1a_ref, w1b_ref, b1_ref,
                 w2a_ref, w2b_ref, b2_ref,
                 wy1_ref, by1_ref, wy2_ref, by2_ref,
                 a1_ref, a2_ref,
                 xh_acc, xw_acc):
    t = pl.program_id(1)
    th = xf_ref.shape[2]

    @pl.when(t == 0)
    def _():
        xw_acc[...] = jnp.zeros_like(xw_acc)

    x3 = xf_ref[0].astype(_F32)                       # (c, th, w)
    start = pl.multiple_of(t * th, th)
    xh_acc[:, pl.ds(start, th)] = jnp.sum(x3, axis=2)  # rows owned by this tile
    xw_acc[...] += jnp.sum(x3, axis=1)                 # accumulate over h tiles

    @pl.when(t == pl.num_programs(1) - 1)
    def _():
        a1, a2 = _gates(xh_acc[...], xw_acc[...], xc_ref[0],
                        w1a_ref[...], w1b_ref[...], b1_ref[...],
                        w2a_ref[...], w2b_ref[...], b2_ref[...],
                        wy1_ref[...], by1_ref[...], wy2_ref[...], by2_ref[...])
        a1_ref[0] = a1
        a2_ref[0] = a2


def _apply_kernel(xf_ref, a1_ref, a2_ref, out_ref):
    t = pl.program_id(1)
    th = xf_ref.shape[2]
    x3 = xf_ref[0].astype(_F32)                        # (c, th, w)
    start = pl.multiple_of(t * th, th)
    a1 = a1_ref[0, :, pl.ds(start, th)]                # (oup, th)
    a2 = a2_ref[0]                                     # (oup, w)
    out_ref[0] = (x3 * a1[:, :, None] * a2[:, None, :]).astype(out_ref.dtype)


# ----------------------------------------------------------------------------
# Wrapper
# ----------------------------------------------------------------------------
def _vmem_capacity_bytes():
    try:
        info = pltpu.get_tpu_info()
        cap = getattr(info, "vmem_capacity_bytes", None)
        if cap:
            return int(cap)
    except Exception:
        pass
    return 64 * 1024 * 1024   # conservative fallback (v7x per-core VMEM)


def _mosaic_params(semantics, want_bytes, cap):
    limit = int(min(cap - 8 * 1024 * 1024, max(32 * 1024 * 1024, want_bytes)))
    return pltpu.CompilerParams(dimension_semantics=semantics,
                                vmem_limit_bytes=limit)


def _fold_params(params, c, h, w):
    """Fold eval-mode BN, conv biases and 1/W, 1/H mean factors into conv1/conv2."""
    mip = params["w1"].shape[0]
    oup = params["wy1"].shape[0]
    eps = 1e-5
    scale = params["bn_gamma"] / jnp.sqrt(params["bn_var"] + eps)
    shift = params["bn_beta"] - params["bn_mean"] * scale
    folded = dict(
        w1a=(params["w1"][:, :c] * scale[:, None]) * (1.0 / w),
        w1b=params["w1"][:, c:] * scale[:, None],
        b1=(params["b1"] * scale + shift).reshape(mip, 1),
        w2a=(params["w2"][:, :c] * scale[:, None]) * (1.0 / h),
        w2b=params["w2"][:, c:] * scale[:, None],
        b2=(params["b2"] * scale + shift).reshape(mip, 1),
        wy1=params["wy1"], by1=params["by1"].reshape(oup, 1),
        wy2=params["wy2"], by2=params["by2"].reshape(oup, 1),
    )
    return {k: v.astype(_F32) for k, v in folded.items()}


def _pick_h_tile(h, c, w, isz, budget):
    """Largest h-tile that divides h, is a multiple of 8, and fits the budget."""
    for th in range(h, 0, -1):
        if h % th or th % 8:
            continue
        step = 4 * c * th * w * isz + c * th * w * 4 + (2 << 20)
        if step <= budget:
            return th
    return None


def _run_resident(x, x_c, p, cap, need, donate_x):
    n, c, h, w = x.shape
    hw = h * w
    dt = x.dtype
    mip = p["w1a"].shape[0]
    oup = p["wy1"].shape[0]

    xf = x.reshape(n, c, hw)                 # free view of contiguous NCHW

    # Hoisted 0/1 selection matrices (built once by XLA, DMA'd once, resident):
    #   r_sel[i, i*w + j] = 1 ; t_sel[j, i*w + j] = 1
    r_sel = jnp.repeat(jnp.eye(h, dtype=dt), w, axis=1)     # (h, hw)
    t_sel = jnp.tile(jnp.eye(w, dtype=dt), (1, h))          # (w, hw)

    def const(shape):
        z = (0,) * len(shape)
        return pl.BlockSpec(shape, lambda b, _z=z: _z)

    grid_spec = pltpu.PrefetchScalarGridSpec(
        num_scalar_prefetch=0,
        grid=(n,),
        in_specs=[
            pl.BlockSpec((1, c, hw), lambda b: (b, 0, 0)),   # x, lane-dense
            pl.BlockSpec((1, h, w), lambda b: (b, 0, 0)),    # pool_c result
            const((h, hw)), const((w, hw)),                  # selection matrices
            const((mip, c)), const((mip, h)), const((mip, 1)),   # conv1 (folded)
            const((mip, c)), const((mip, h)), const((mip, 1)),   # conv2 (folded)
            const((oup, mip)), const((oup, 1)),                  # conv_y1
            const((oup, mip)), const((oup, 1)),                  # conv_y2
        ],
        out_specs=pl.BlockSpec((1, c, hw), lambda b: (b, 0, 0)),
    )

    out = pl.pallas_call(
        _resident_kernel,
        out_shape=jax.ShapeDtypeStruct((n, c, hw), dt),
        grid_spec=grid_spec,
        compiler_params=_mosaic_params(("parallel",), need, cap),
        input_output_aliases=({0: 0} if donate_x else {}),
    )(xf, x_c, r_sel, t_sel,
      p["w1a"], p["w1b"], p["b1"], p["w2a"], p["w2b"], p["b2"],
      p["wy1"], p["by1"], p["wy2"], p["by2"])
    return out.reshape(n, c, h, w)


def _run_tiled(x, x_c, p, cap, th, donate_x):
    n, c, h, w = x.shape
    dt = x.dtype
    isz = jnp.dtype(dt).itemsize
    mip = p["w1a"].shape[0]
    oup = p["wy1"].shape[0]
    nt = h // th

    def const2(shape):
        z = (0,) * len(shape)
        return pl.BlockSpec(shape, lambda b, t, _z=z: _z)

    # ---- pass A: pooling + gates ------------------------------------------
    pool_need = 2 * c * th * w * isz + c * th * w * 4 + c * (h + w) * 4 + (2 << 20)
    a1, a2 = pl.pallas_call(
        _pool_kernel,
        out_shape=(jax.ShapeDtypeStruct((n, oup, h), _F32),
                   jax.ShapeDtypeStruct((n, oup, w), _F32)),
        grid_spec=pltpu.PrefetchScalarGridSpec(
            num_scalar_prefetch=0,
            grid=(n, nt),
            in_specs=[
                pl.BlockSpec((1, c, th, w), lambda b, t: (b, 0, t, 0)),
                pl.BlockSpec((1, h, w), lambda b, t: (b, 0, 0)),
                const2((mip, c)), const2((mip, h)), const2((mip, 1)),
                const2((mip, c)), const2((mip, h)), const2((mip, 1)),
                const2((oup, mip)), const2((oup, 1)),
                const2((oup, mip)), const2((oup, 1)),
            ],
            out_specs=[pl.BlockSpec((1, oup, h), lambda b, t: (b, 0, 0)),
                       pl.BlockSpec((1, oup, w), lambda b, t: (b, 0, 0))],
            scratch_shapes=[pltpu.VMEM((c, h), _F32),
                            pltpu.VMEM((c, w), _F32)],
        ),
        compiler_params=_mosaic_params(("parallel", "arbitrary"), pool_need, cap),
    )(x, x_c,
      p["w1a"], p["w1b"], p["b1"], p["w2a"], p["w2b"], p["b2"],
      p["wy1"], p["by1"], p["wy2"], p["by2"])

    # ---- pass B: gate apply (both axes parallel -> v7x megacore at n==1) ---
    apply_need = 4 * c * th * w * isz + c * th * w * 4 + (2 << 20)
    out = pl.pallas_call(
        _apply_kernel,
        out_shape=jax.ShapeDtypeStruct((n, c, h, w), dt),
        grid_spec=pltpu.PrefetchScalarGridSpec(
            num_scalar_prefetch=0,
            grid=(n, nt),
            in_specs=[
                pl.BlockSpec((1, c, th, w), lambda b, t: (b, 0, t, 0)),
                pl.BlockSpec((1, oup, h), lambda b, t: (b, 0, 0)),
                pl.BlockSpec((1, oup, w), lambda b, t: (b, 0, 0)),
            ],
            out_specs=pl.BlockSpec((1, c, th, w), lambda b, t: (b, 0, t, 0)),
        ),
        compiler_params=_mosaic_params(("parallel", "parallel"), apply_need, cap),
        input_output_aliases=({0: 0} if donate_x else {}),
    )(x, a1, a2)
    return out


def channel_aware_coordatt(x, params, *, force_mode=None, h_tile=None,
                           donate_x=False):
    """Channel_aware_CoordAtt forward (eval-mode BN).

    Total HBM traffic: 2 reads of x (one by XLA for pool_c, one by the kernel)
    + 1 write of the output, in x's native dtype.
    """
    n, c, h, w = x.shape
    assert h == w, "Channel_aware_CoordAtt requires square spatial dims (h == w)"
    mip = params["w1"].shape[0]
    oup = params["wy1"].shape[0]
    assert oup == c, "final gate multiply requires oup == inp"
    del mip
    hw = h * w
    dt = x.dtype
    isz = jnp.dtype(dt).itemsize

    # pool_c: mean over the trailing axis of torch's x.reshape(n, h, w, c) view
    # of the same flat memory (computed by XLA; not expressible from the NCHW
    # tile inside the kernel without a gather).
    x_c = jnp.mean(x.reshape(n, hw, c).astype(_F32), axis=2).reshape(n, h, w)

    p = _fold_params(params, c, h, w)

    cap = _vmem_capacity_bytes()
    budget = max(cap - 16 * 1024 * 1024, 24 * 1024 * 1024)

    # Honest per-step residency estimate for the resident single-pass path:
    # double-buffered in + out slabs, both selection matrices, and the f32
    # gate/product intermediates.
    slab = c * hw * isz
    sel_bytes = (h + w) * hw * isz
    resident_need = 4 * slab + 2 * sel_bytes + 3 * c * hw * 4 + (2 << 20)

    mode = force_mode if force_mode is not None else (
        "resident" if resident_need <= budget else "tiled")

    th = None
    if mode == "tiled":
        if h_tile is not None:
            assert h % h_tile == 0 and h_tile % 8 == 0, "bad h_tile"
            th = h_tile
        else:
            th = _pick_h_tile(h, c, w, isz, budget)
        if th is None:
            mode = "resident"   # best effort: no legal h tile (h % 8 != 0)

    if mode == "resident":
        return _run_resident(x, x_c, p, cap, resident_need, donate_x)
    return _run_tiled(x, x_c, p, cap, th, donate_x)


# ----------------------------------------------------------------------------
# Parameters + pure-JAX reference
# ----------------------------------------------------------------------------
def init_params(key, inp, oup, h, w, reduction=32):
    mip = max(8, (inp + h) // reduction)
    ks = jax.random.split(key, 8)

    def u(k, shape, fan_in):
        bound = 1.0 / (fan_in ** 0.5)
        return jax.random.uniform(k, shape, jnp.float32, -bound, bound)

    return {
        "w1": u(ks[0], (mip, inp + h), inp + h),
        "b1": u(ks[1], (mip,), inp + h),
        "w2": u(ks[2], (mip, inp + h), inp + h),
        "b2": u(ks[3], (mip,), inp + h),
        "wy1": u(ks[4], (oup, mip), mip),
        "by1": u(ks[5], (oup,), mip),
        "wy2": u(ks[6], (oup, mip), mip),
        "by2": u(ks[7], (oup,), mip),
        # BatchNorm2d(mip), eval mode, deterministic stats/affine
        "bn_gamma": jnp.linspace(0.8, 1.2, mip, dtype=jnp.float32),
        "bn_beta": jnp.linspace(-0.1, 0.1, mip, dtype=jnp.float32),
        "bn_mean": jnp.linspace(-0.05, 0.05, mip, dtype=jnp.float32),
        "bn_var": jnp.linspace(0.9, 1.1, mip, dtype=jnp.float32),
    }


def _reference(x, params):
    # Pure-JAX mirror of the PyTorch forward (eval-mode BN).
    n, c, h, w = x.shape
    eps = 1e-5
    x_h = jnp.mean(x, axis=3)                       # (n, c, h)
    x_w = jnp.mean(x, axis=2)                       # (n, c, w)
    chan = x.reshape(n, h, w, c)
    x_c = jnp.mean(chan, axis=3)                    # (n, h, w)
    temp = jnp.transpose(x_c, (0, 2, 1))            # (n, w, h)
    y1in = jnp.concatenate([x_h, temp], axis=1)     # (n, c+w, h)
    y2in = jnp.concatenate([x_w, x_c], axis=1)      # (n, c+h, w)

    s = params["bn_gamma"] / jnp.sqrt(params["bn_var"] + eps)
    t = params["bn_beta"] - params["bn_mean"] * s
    bn = lambda v: v * s[None, :, None] + t[None, :, None]
    hsw = lambda v: v * jnp.clip(v + 3.0, 0.0, 6.0) / 6.0

    y1 = jnp.einsum("oc,nch->noh", params["w1"], y1in) + params["b1"][None, :, None]
    y1 = hsw(bn(y1))
    y2 = jnp.einsum("oc,ncw->now", params["w2"], y2in) + params["b2"][None, :, None]
    y2 = hsw(bn(y2))
    a1 = jax.nn.sigmoid(jnp.einsum("om,nmh->noh", params["wy1"], y1)
                        + params["by1"][None, :, None])
    a2 = jax.nn.sigmoid(jnp.einsum("om,nmw->now", params["wy2"], y2)
                        + params["by2"][None, :, None])
    return x * a1[:, :, :, None] * a2[:, :, None, :]


if __name__ == "__main__":
    key = jax.random.PRNGKey(0)
    k_x, k_p = jax.random.split(key)

    n, inp, oup, h, w = 2, 4, 4, 16, 16          # oup == inp, h == w (module requirement)
    x = jax.random.normal(k_x, (n, inp, h, w), dtype=jnp.float32)
    params = init_params(k_p, inp, oup, h, w, reduction=32)
    ref = _reference(x, params)

    # 1) default path: fully fused, slab resident in VMEM (f32)
    out = jax.block_until_ready(channel_aware_coordatt(x, params))
    assert out.shape == (n, oup, h, w)
    d = float(jnp.max(jnp.abs(out - ref)))
    assert jnp.allclose(out, ref, atol=2e-5, rtol=2e-5), f"resident mismatch {d}"

    # 2) forced tiled two-pass path (large-slab / megacore fallback), f32
    out_t = jax.block_until_ready(
        channel_aware_coordatt(x, params, force_mode="tiled", h_tile=8))
    d = float(jnp.max(jnp.abs(out_t - ref)))
    assert jnp.allclose(out_t, ref, atol=5e-5, rtol=5e-5), f"tiled mismatch {d}"

    # 3) native-dtype (bf16) activations: halves slab HBM traffic; relaxed tol.
    xb = x.astype(jnp.bfloat16)
    out_b = jax.block_until_ready(channel_aware_coordatt(xb, params))
    assert out_b.dtype == jnp.bfloat16
    ref_b = _reference(xb.astype(jnp.float32), params)
    d = float(jnp.max(jnp.abs(out_b.astype(jnp.float32) - ref_b)))
    assert jnp.allclose(out_b.astype(jnp.float32), ref_b, atol=5e-2, rtol=5e-2), \
        f"bf16 mismatch {d}"

    print("KERNEL_OK")
</pallas_src>

<mosaic_0001>
module attributes {stable_mosaic.version = 11 : i64} {
  func.func @_resident_kernel(%arg0: i32, %arg1: memref<1x4x256xf32, #tpu.memory_space<vmem>>, %arg2: memref<1x16x16xf32, #tpu.memory_space<vmem>>, %arg3: memref<16x256xf32, #tpu.memory_space<vmem>>, %arg4: memref<16x256xf32, #tpu.memory_space<vmem>>, %arg5: memref<8x4xf32, #tpu.memory_space<vmem>>, %arg6: memref<8x16xf32, #tpu.memory_space<vmem>>, %arg7: memref<8x1xf32, #tpu.memory_space<vmem>>, %arg8: memref<8x4xf32, #tpu.memory_space<vmem>>, %arg9: memref<8x16xf32, #tpu.memory_space<vmem>>, %arg10: memref<8x1xf32, #tpu.memory_space<vmem>>, %arg11: memref<4x8xf32, #tpu.memory_space<vmem>>, %arg12: memref<4x1xf32, #tpu.memory_space<vmem>>, %arg13: memref<4x8xf32, #tpu.memory_space<vmem>>, %arg14: memref<4x1xf32, #tpu.memory_space<vmem>>, %arg15: memref<1x4x256xf32, #tpu.memory_space<vmem>>) attributes {dimension_semantics = [#tpu.dimension_semantics<parallel>], iteration_bounds = array<i64: 2>, scalar_prefetch = 0 : i64, scratch_operands = 0 : i64, tpu.core_type = #tpu.core_type<tc>, window_params = [{transform_indices = @transform_0, window_bounds = array<i64: 1, 4, 256>}, {transform_indices = @transform_1, window_bounds = array<i64: 1, 16, 16>}, {pipeline_mode = #tpu.pipeline_mode<synchronous>, transform_indices = @transform_2, window_bounds = array<i64: 16, 256>}, {pipeline_mode = #tpu.pipeline_mode<synchronous>, transform_indices = @transform_3, window_bounds = array<i64: 16, 256>}, {pipeline_mode = #tpu.pipeline_mode<synchronous>, transform_indices = @transform_4, window_bounds = array<i64: 8, 4>}, {pipeline_mode = #tpu.pipeline_mode<synchronous>, transform_indices = @transform_5, window_bounds = array<i64: 8, 16>}, {pipeline_mode = #tpu.pipeline_mode<synchronous>, transform_indices = @transform_6, window_bounds = array<i64: 8, 1>}, {pipeline_mode = #tpu.pipeline_mode<synchronous>, transform_indices = @transform_7, window_bounds = array<i64: 8, 4>}, {pipeline_mode = #tpu.pipeline_mode<synchronous>, transform_indices = @transform_8, window_bounds = array<i64: 8, 16>}, {pipeline_mode = #tpu.pipeline_mode<synchronous>, transform_indices = @transform_9, window_bounds = array<i64: 8, 1>}, {pipeline_mode = #tpu.pipeline_mode<synchronous>, transform_indices = @transform_10, window_bounds = array<i64: 4, 8>}, {pipeline_mode = #tpu.pipeline_mode<synchronous>, transform_indices = @transform_11, window_bounds = array<i64: 4, 1>}, {pipeline_mode = #tpu.pipeline_mode<synchronous>, transform_indices = @transform_12, window_bounds = array<i64: 4, 8>}, {pipeline_mode = #tpu.pipeline_mode<synchronous>, transform_indices = @transform_13, window_bounds = array<i64: 4, 1>}, {transform_indices = @transform_14, window_bounds = array<i64: 1, 4, 256>}]} {
    %c0 = arith.constant 0 : index
    %c0_0 = arith.constant 0 : index
    %c0_1 = arith.constant 0 : index
    %0 = vector.load %arg1[%c0, %c0_0, %c0_1] : memref<1x4x256xf32, #tpu.memory_space<vmem>>, vector<1x4x256xf32>
    %1 = vector.shape_cast %0 : vector<1x4x256xf32> to vector<4x256xf32>
    %c0_2 = arith.constant 0 : index
    %c0_3 = arith.constant 0 : index
    %2 = vector.load %arg3[%c0_2, %c0_3] : memref<16x256xf32, #tpu.memory_space<vmem>>, vector<16x256xf32>
    %c0_4 = arith.constant 0 : index
    %c0_5 = arith.constant 0 : index
    %3 = vector.load %arg4[%c0_4, %c0_5] : memref<16x256xf32, #tpu.memory_space<vmem>>, vector<16x256xf32>
    %cst = arith.constant dense<0.000000e+00> : vector<4x16xf32>
    %4 = tpu.matmul %1, %2, %cst {dimension_numbers = #tpu.dot_dimension_numbers<[1], [1], [0], [0], [0, 0, 1, 0], [], []>} : vector<4x256xf32>, vector<16x256xf32>, vector<4x16xf32> -> vector<4x16xf32>
    %cst_6 = arith.constant dense<0.000000e+00> : vector<4x16xf32>
    %5 = tpu.matmul %1, %3, %cst_6 {dimension_numbers = #tpu.dot_dimension_numbers<[1], [1], [0], [0], [0, 0, 1, 0], [], []>} : vector<4x256xf32>, vector<16x256xf32>, vector<4x16xf32> -> vector<4x16xf32>
    %c0_7 = arith.constant 0 : index
    %c0_8 = arith.constant 0 : index
    %c0_9 = arith.constant 0 : index
    %6 = vector.load %arg2[%c0_7, %c0_8, %c0_9] : memref<1x16x16xf32, #tpu.memory_space<vmem>>, vector<1x16x16xf32>
    %7 = vector.shape_cast %6 : vector<1x16x16xf32> to vector<16x16xf32>
    %c0_10 = arith.constant 0 : index
    %c0_11 = arith.constant 0 : index
    %8 = vector.load %arg5[%c0_10, %c0_11] : memref<8x4xf32, #tpu.memory_space<vmem>>, vector<8x4xf32>
    %c0_12 = arith.constant 0 : index
    %c0_13 = arith.constant 0 : index
    %9 = vector.load %arg6[%c0_12, %c0_13] : memref<8x16xf32, #tpu.memory_space<vmem>>, vector<8x16xf32>
    %c0_14 = arith.constant 0 : index
    %c0_15 = arith.constant 0 : index
    %10 = vector.load %arg7[%c0_14, %c0_15] : memref<8x1xf32, #tpu.memory_space<vmem>>, vector<8x1xf32>
    %c0_16 = arith.constant 0 : index
    %c0_17 = arith.constant 0 : index
    %11 = vector.load %arg8[%c0_16, %c0_17] : memref<8x4xf32, #tpu.memory_space<vmem>>, vector<8x4xf32>
    %c0_18 = arith.constant 0 : index
    %c0_19 = arith.constant 0 : index
    %12 = vector.load %arg9[%c0_18, %c0_19] : memref<8x16xf32, #tpu.memory_space<vmem>>, vector<8x16xf32>
    %c0_20 = arith.constant 0 : index
    %c0_21 = arith.constant 0 : index
    %13 = vector.load %arg10[%c0_20, %c0_21] : memref<8x1xf32, #tpu.memory_space<vmem>>, vector<8x1xf32>
    %c0_22 = arith.constant 0 : index
    %c0_23 = arith.constant 0 : index
    %14 = vector.load %arg11[%c0_22, %c0_23] : memref<4x8xf32, #tpu.memory_space<vmem>>, vector<4x8xf32>
    %c0_24 = arith.constant 0 : index
    %c0_25 = arith.constant 0 : index
    %15 = vector.load %arg12[%c0_24, %c0_25] : memref<4x1xf32, #tpu.memory_space<vmem>>, vector<4x1xf32>
    %c0_26 = arith.constant 0 : index
    %c0_27 = arith.constant 0 : index
    %16 = vector.load %arg13[%c0_26, %c0_27] : memref<4x8xf32, #tpu.memory_space<vmem>>, vector<4x8xf32>
    %c0_28 = arith.constant 0 : index
    %c0_29 = arith.constant 0 : index
    %17 = vector.load %arg14[%c0_28, %c0_29] : memref<4x1xf32, #tpu.memory_space<vmem>>, vector<4x1xf32>
    %cst_30 = arith.constant dense<0.000000e+00> : vector<8x16xf32>
    %18 = tpu.matmul %8, %4, %cst_30 {dimension_numbers = #tpu.dot_dimension_numbers<[1], [0], [0], [1], [0, 0, 1, 1], [], []>} : vector<8x4xf32>, vector<4x16xf32>, vector<8x16xf32> -> vector<8x16xf32>
    %cst_31 = arith.constant dense<0.000000e+00> : vector<8x16xf32>
    %19 = tpu.matmul %9, %7, %cst_31 {dimension_numbers = #tpu.dot_dimension_numbers<[1], [1], [0], [0], [0, 0, 1, 0], [], []>} : vector<8x16xf32>, vector<16x16xf32>, vector<8x16xf32> -> vector<8x16xf32>
    %20 = arith.addf %18, %19 : vector<8x16xf32>
    %21 = vector.broadcast %10 : vector<8x1xf32> to vector<8x16xf32>
    %22 = arith.addf %20, %21 : vector<8x16xf32>
    %cst_32 = arith.constant 3.000000e+00 : f32
    %23 = vector.broadcast %cst_32 : f32 to vector<8x16xf32>
    %24 = arith.addf %22, %23 : vector<8x16xf32>
    %cst_33 = arith.constant 0.000000e+00 : f32
    %cst_34 = arith.constant 6.000000e+00 : f32
    %25 = vector.broadcast %cst_33 : f32 to vector<8x16xf32>
    %26 = arith.maximumf %25, %24 : vector<8x16xf32>
    %27 = vector.broadcast %cst_34 : f32 to vector<8x16xf32>
    %28 = arith.minimumf %27, %26 : vector<8x16xf32>
    %cst_35 = arith.constant 0.166666672 : f32
    %29 = vector.broadcast %cst_35 : f32 to vector<8x16xf32>
    %30 = arith.mulf %28, %29 : vector<8x16xf32>
    %31 = arith.mulf %22, %30 : vector<8x16xf32>
    %cst_36 = arith.constant dense<0.000000e+00> : vector<8x16xf32>
    %32 = tpu.matmul %11, %5, %cst_36 {dimension_numbers = #tpu.dot_dimension_numbers<[1], [0], [0], [1], [0, 0, 1, 1], [], []>} : vector<8x4xf32>, vector<4x16xf32>, vector<8x16xf32> -> vector<8x16xf32>
    %cst_37 = arith.constant dense<0.000000e+00> : vector<8x16xf32>
    %33 = tpu.matmul %12, %7, %cst_37 {dimension_numbers = #tpu.dot_dimension_numbers<[1], [0], [0], [1], [0, 0, 1, 1], [], []>} : vector<8x16xf32>, vector<16x16xf32>, vector<8x16xf32> -> vector<8x16xf32>
    %34 = arith.addf %32, %33 : vector<8x16xf32>
    %35 = vector.broadcast %13 : vector<8x1xf32> to vector<8x16xf32>
    %36 = arith.addf %34, %35 : vector<8x16xf32>
    %cst_38 = arith.constant 3.000000e+00 : f32
    %37 = vector.broadcast %cst_38 : f32 to vector<8x16xf32>
    %38 = arith.addf %36, %37 : vector<8x16xf32>
    %cst_39 = arith.constant 0.000000e+00 : f32
    %cst_40 = arith.constant 6.000000e+00 : f32
    %39 = vector.broadcast %cst_39 : f32 to vector<8x16xf32>
    %40 = arith.maximumf %39, %38 : vector<8x16xf32>
    %41 = vector.broadcast %cst_40 : f32 to vector<8x16xf32>
    %42 = arith.minimumf %41, %40 : vector<8x16xf32>
    %cst_41 = arith.constant 0.166666672 : f32
    %43 = vector.broadcast %cst_41 : f32 to vector<8x16xf32>
    %44 = arith.mulf %42, %43 : vector<8x16xf32>
    %45 = arith.mulf %36, %44 : vector<8x16xf32>
    %cst_42 = arith.constant dense<0.000000e+00> : vector<4x16xf32>
    %46 = tpu.matmul %14, %31, %cst_42 {dimension_numbers = #tpu.dot_dimension_numbers<[1], [0], [0], [1], [0, 0, 1, 1], [], []>} : vector<4x8xf32>, vector<8x16xf32>, vector<4x16xf32> -> vector<4x16xf32>
    %47 = vector.broadcast %15 : vector<4x1xf32> to vector<4x16xf32>
    %48 = arith.addf %46, %47 : vector<4x16xf32>
    %49 = arith.negf %48 : vector<4x16xf32>
    %50 = math.exp %49 : vector<4x16xf32>
    %cst_43 = arith.constant 1.000000e+00 : f32
    %51 = vector.broadcast %cst_43 : f32 to vector<4x16xf32>
    %52 = arith.addf %51, %50 : vector<4x16xf32>
    %53 = arith.divf %51, %52 : vector<4x16xf32>
    %cst_44 = arith.constant dense<0.000000e+00> : vector<4x16xf32>
    %54 = tpu.matmul %16, %45, %cst_44 {dimension_numbers = #tpu.dot_dimension_numbers<[1], [0], [0], [1], [0, 0, 1, 1], [], []>} : vector<4x8xf32>, vector<8x16xf32>, vector<4x16xf32> -> vector<4x16xf32>
    %55 = vector.broadcast %17 : vector<4x1xf32> to vector<4x16xf32>
    %56 = arith.addf %54, %55 : vector<4x16xf32>
    %57 = arith.negf %56 : vector<4x16xf32>
    %58 = math.exp %57 : vector<4x16xf32>
    %cst_45 = arith.constant 1.000000e+00 : f32
    %59 = vector.broadcast %cst_45 : f32 to vector<4x16xf32>
    %60 = arith.addf %59, %58 : vector<4x16xf32>
    %61 = arith.divf %59, %60 : vector<4x16xf32>
    %cst_46 = arith.constant dense<0.000000e+00> : vector<4x256xf32>
    %62 = tpu.matmul %53, %2, %cst_46 {dimension_numbers = #tpu.dot_dimension_numbers<[1], [0], [0], [1], [0, 0, 1, 1], [], []>} : vector<4x16xf32>, vector<16x256xf32>, vector<4x256xf32> -> vector<4x256xf32>
    %cst_47 = arith.constant dense<0.000000e+00> : vector<4x256xf32>
    %63 = tpu.matmul %61, %3, %cst_47 {dimension_numbers = #tpu.dot_dimension_numbers<[1], [0], [0], [1], [0, 0, 1, 1], [], []>} : vector<4x16xf32>, vector<16x256xf32>, vector<4x256xf32> -> vector<4x256xf32>
    %64 = arith.mulf %1, %62 : vector<4x256xf32>
    %65 = arith.mulf %64, %63 : vector<4x256xf32>
    %c0_48 = arith.constant 0 : index
    %c0_49 = arith.constant 0 : index
    %c0_50 = arith.constant 0 : index
    %66 = vector.load %arg15[%c0_48, %c0_49, %c0_50] : memref<1x4x256xf32, #tpu.memory_space<vmem>>, vector<1x4x256xf32>
    %67 = vector.shape_cast %66 : vector<1x4x256xf32> to vector<4x256xf32>
    %68 = vector.shape_cast %65 : vector<4x256xf32> to vector<1x4x256xf32>
    tpu.vector_store %arg15[%c0_48, %c0_49, %c0_50], %68 {strides = array<i32>} : memref<1x4x256xf32, #tpu.memory_space<vmem>>, vector<1x4x256xf32>,
    return
  }
  func.func @transform_0(%arg0: i32) -> (i32, i32, i32) {
    %c0_i32 = arith.constant 0 : i32
    %c0_i32_0 = arith.constant 0 : i32
    %c0_i32_1 = arith.constant 0 : i32
    return %arg0, %c0_i32, %c0_i32_0 : i32, i32, i32
  }
  func.func @transform_1(%arg0: i32) -> (i32, i32, i32) {
    %c0_i32 = arith.constant 0 : i32
    %c0_i32_0 = arith.constant 0 : i32
    %c0_i32_1 = arith.constant 0 : i32
    return %arg0, %c0_i32, %c0_i32_0 : i32, i32, i32
  }
  func.func @transform_2(%arg0: i32) -> (i32, i32) {
    %c0_i32 = arith.constant 0 : i32
    %c0_i32_0 = arith.constant 0 : i32
    %c0_i32_1 = arith.constant 0 : i32
    return %c0_i32, %c0_i32_0 : i32, i32
  }
  func.func @transform_3(%arg0: i32) -> (i32, i32) {
    %c0_i32 = arith.constant 0 : i32
    %c0_i32_0 = arith.constant 0 : i32
    %c0_i32_1 = arith.constant 0 : i32
    return %c0_i32, %c0_i32_0 : i32, i32
  }
  func.func @transform_4(%arg0: i32) -> (i32, i32) {
    %c0_i32 = arith.constant 0 : i32
    %c0_i32_0 = arith.constant 0 : i32
    %c0_i32_1 = arith.constant 0 : i32
    return %c0_i32, %c0_i32_0 : i32, i32
  }
  func.func @transform_5(%arg0: i32) -> (i32, i32) {
    %c0_i32 = arith.constant 0 : i32
    %c0_i32_0 = arith.constant 0 : i32
    %c0_i32_1 = arith.constant 0 : i32
    return %c0_i32, %c0_i32_0 : i32, i32
  }
  func.func @transform_6(%arg0: i32) -> (i32, i32) {
    %c0_i32 = arith.constant 0 : i32
    %c0_i32_0 = arith.constant 0 : i32
    %c0_i32_1 = arith.constant 0 : i32
    return %c0_i32, %c0_i32_0 : i32, i32
  }
  func.func @transform_7(%arg0: i32) -> (i32, i32) {
    %c0_i32 = arith.constant 0 : i32
    %c0_i32_0 = arith.constant 0 : i32
    %c0_i32_1 = arith.constant 0 : i32
    return %c0_i32, %c0_i32_0 : i32, i32
  }
  func.func @transform_8(%arg0: i32) -> (i32, i32) {
    %c0_i32 = arith.constant 0 : i32
    %c0_i32_0 = arith.constant 0 : i32
    %c0_i32_1 = arith.constant 0 : i32
    return %c0_i32, %c0_i32_0 : i32, i32
  }
  func.func @transform_9(%arg0: i32) -> (i32, i32) {
    %c0_i32 = arith.constant 0 : i32
    %c0_i32_0 = arith.constant 0 : i32
    %c0_i32_1 = arith.constant 0 : i32
    return %c0_i32, %c0_i32_0 : i32, i32
  }
  func.func @transform_10(%arg0: i32) -> (i32, i32) {
    %c0_i32 = arith.constant 0 : i32
    %c0_i32_0 = arith.constant 0 : i32
    %c0_i32_1 = arith.constant 0 : i32
    return %c0_i32, %c0_i32_0 : i32, i32
  }
  func.func @transform_11(%arg0: i32) -> (i32, i32) {
    %c0_i32 = arith.constant 0 : i32
    %c0_i32_0 = arith.constant 0 : i32
    %c0_i32_1 = arith.constant 0 : i32
    return %c0_i32, %c0_i32_0 : i32, i32
  }
  func.func @transform_12(%arg0: i32) -> (i32, i32) {
    %c0_i32 = arith.constant 0 : i32
    %c0_i32_0 = arith.constant 0 : i32
    %c0_i32_1 = arith.constant 0 : i32
    return %c0_i32, %c0_i32_0 : i32, i32
  }
  func.func @transform_13(%arg0: i32) -> (i32, i32) {
    %c0_i32 = arith.constant 0 : i32
    %c0_i32_0 = arith.constant 0 : i32
    %c0_i32_1 = arith.constant 0 : i32
    return %c0_i32, %c0_i32_0 : i32, i32
  }
  func.func @transform_14(%arg0: i32) -> (i32, i32, i32) {
    %c0_i32 = arith.constant 0 : i32
    %c0_i32_0 = arith.constant 0 : i32
    %c0_i32_1 = arith.constant 0 : i32
    return %arg0, %c0_i32, %c0_i32_0 : i32, i32, i32
  }
}

</mosaic_0001>

<llo_original>
// kernel: tpu_custom_call.1
$region0: #{tpu_custom_call.1}
  #allocation0 [shape = 'u32[]', space=smem, size = 0x4, offset = 0x4, fixed_abs, tag = 'smem constant byte address 0x4 - core index']
  #allocation1 [shape = 'u32[144,128]{1,0:T(1,128)}', space=vmem, size = 0x12000, scoped, tag = 'internal scratch']
  %s0 = inlined_call_operand.vmem [shape: f32[2,4,256], index: 0, kind: input, shape index: {}]
  %s1 = inlined_call_operand.vmem [shape: f32[2,16,16], index: 1, kind: input, shape index: {}]
  %s2 = inlined_call_operand.hbm [shape: f32[16,256], index: 2, kind: input, shape index: {}]
  %s3 = inlined_call_operand.hbm [shape: f32[16,256], index: 3, kind: input, shape index: {}]
  %s4 = inlined_call_operand.vmem [shape: f32[8,4], index: 4, kind: input, shape index: {}]
  %s5 = inlined_call_operand.vmem [shape: f32[8,16], index: 5, kind: input, shape index: {}]
  %s6 = inlined_call_operand.vmem [shape: f32[8,1], index: 6, kind: input, shape index: {}]
  %s7 = inlined_call_operand.vmem [shape: f32[8,4], index: 7, kind: input, shape index: {}]
  %s8 = inlined_call_operand.vmem [shape: f32[8,16], index: 8, kind: input, shape index: {}]
  %s9 = inlined_call_operand.vmem [shape: f32[8,1], index: 9, kind: input, shape index: {}]
  %s10 = inlined_call_operand.vmem [shape: f32[4,8], index: 10, kind: input, shape index: {}]
  %s11 = inlined_call_operand.vmem [shape: f32[4,1], index: 11, kind: input, shape index: {}]
  %s12 = inlined_call_operand.vmem [shape: f32[4,8], index: 12, kind: input, shape index: {}]
  %s13 = inlined_call_operand.vmem [shape: f32[4,1], index: 13, kind: input, shape index: {}]
  %s14 = inlined_call_operand.hbm [shape: f32[2,4,256], index: 14, kind: output, shape index: {}]
  %s15 = sld [smem:[#allocation0]]
  $region97: #{tpu_custom_call.1} parent=0
    _
  %s17 = ssub.s32 1, %s15
  %s18 = scalar_select 0, %s17, %s15
  $region1: #{tpu_custom_call.1} parent=0
    #allocation2 [shape = 'u8[16384]{0}', space=vmem, size = 0x4000, scoped, tag = 'input window, operand 2, single buffered']
    #allocation3 [shape = 's32[2]{0}', space=sflag, size = 0x8, scoped, tag = 'scoped memory for tpu_custom_call.1']
    #allocation4 [shape = 's32[2]{0}', space=sflag, size = 0x8, scoped, tag = 'scoped memory for tpu_custom_call.1']
    #allocation5 [shape = 'u8[16384]{0}', space=vmem, size = 0x4000, scoped, tag = 'input window, operand 3, single buffered']
    #allocation6 [shape = 's32[1]{0}', space=sflag, size = 0x4, scoped, tag = 'scoped memory for tpu_custom_call.1']
    #allocation7 [shape = 'u8[8192]{0}', space=vmem, size = 0x2000, scoped, tag = 'output window, operand 0']
    %19 = vsyncpa [#allocation3], 0
    %20 = vsyncpa [#allocation6], 0
    %21 = vsyncpa [#allocation4], 0
    %s22 = scalar_lea.sflag [#allocation4], 1
    %23 = vsyncpa %s22, 0
    loop: start=0, step=1, limit=4
    $region2: #{tpu_custom_call.1} parent=1 // loop_pre_header
      _
    $region3: #{tpu_custom_call.1} parent=1 // loop_header
      %s25 = sphi 0, %s29
      %p26 = scmp.ge.s32.totalorder %s25, 4
      %s35 = sphi 0, %s37
      %s38 = sphi 0, %s35
      %s39 = sphi 0, %s38
      %s55 = sphi 0, %s39
      %s61 = sphi 0, %s63
      %s64 = sphi 0, %s61
      %s65 = sphi 0, %s64
      %s81 = sphi 0, %s65
      %s85 = sphi 0, %s85
      %s87 = sphi 0, %s85
      %s88 = sphi 0, %s87
      %s102 = sphi 0, %s88
      %s106 = sphi 0, %s106
      %s108 = sphi 0, %s106
      %s109 = sphi 0, %s108
      %s123 = sphi 0, %s109
      %s127 = sphi 0, %s127
      %s129 = sphi 0, %s127
      %s130 = sphi 0, %s129
      %s144 = sphi 0, %s130
      %s148 = sphi 0, %s148
      %s150 = sphi 0, %s148
      %s151 = sphi 0, %s150
      %s165 = sphi 0, %s151
      %s169 = sphi 0, %s169
      %s171 = sphi 0, %s169
      %s172 = sphi 0, %s171
      %s186 = sphi 0, %s172
      %s190 = sphi 0, %s190
      %s192 = sphi 0, %s190
      %s193 = sphi 0, %s192
      %s207 = sphi 0, %s193
      %s211 = sphi 0, %s211
      %s213 = sphi 0, %s211
      %s214 = sphi 0, %s213
      %s228 = sphi 0, %s214
      %s232 = sphi 0, %s232
      %s234 = sphi 0, %s232
      %s235 = sphi 0, %s234
      %s249 = sphi 0, %s235
      %s253 = sphi 0, %s253
      %s255 = sphi 0, %s253
      %s256 = sphi 0, %s255
      %s270 = sphi 0, %s256
      %s274 = sphi 0, %s274
      %s276 = sphi 0, %s274
      %s277 = sphi 0, %s276
      %s291 = sphi 0, %s277
      %s295 = sphi 0, %s295
      %s297 = sphi 0, %s295
      %s298 = sphi 0, %s297
      %s312 = sphi 0, %s298
      %s316 = sphi 0, %s316
      %s318 = sphi 0, %s316
      %s319 = sphi 0, %s318
      %s333 = sphi 0, %s319
      %s339 = sphi 0, %s341
      %s342 = sphi 0, %s339
      %s343 = sphi 0, %s342
      %s359 = sphi 0, %s343
    $region4: #{tpu_custom_call.1} parent=1 // loop_header_branch
      %28 = sbr.rel (%p26) target = $region8
    $region5: #{tpu_custom_call.1} parent=1 // loop_body
      %s30 = ssub.s32 %s25, 1
      %s31 = ssub.s32 %s25, 2
      %s32 = sadd.s32 %s25, 1
      %s33 = ssub.s32 %s25, %s32
      %p34 = scmp.eq.s32.totalorder %s33, 0
      %s36 = sadd.s32 %s35, 1
      %s37 = scalar_select %p34, %s35, %s36
      %p40 = pneg %p34
      %p41 = scmp.eq.s32.totalorder %s25, 1
      %p42 = por %p40, %p41
      %p43 = scmp.ne.s32.totalorder %s35, %s38
      %p44 = scmp.eq.s32.totalorder %s25, 0
      %p45 = por %p43, %p44
      %p46 = scmp.ne.s32.totalorder %s35, %s38
      %p47 = scmp.eq.s32.totalorder %s30, 1
      %p48 = por %p46, %p47
      %p49 = scmp.ne.s32.totalorder %s38, %s39
      %p50 = scmp.eq.s32.totalorder %s30, 0
      %p51 = por %p49, %p50
      %p52 = scmp.ne.s32.totalorder %s38, %s39
      %p53 = scmp.eq.s32.totalorder %s31, 1
      %p54 = por %p52, %p53
      %p56 = scmp.ne.s32.totalorder %s39, %s55
      %p57 = scmp.eq.s32.totalorder %s31, 0
      %p58 = por %p56, %p57
      %s59 = ssub.s32 %s25, %s32
      %p60 = scmp.eq.s32.totalorder %s59, 0
      %s62 = sadd.s32 %s61, 1
      %s63 = scalar_select %p60, %s61, %s62
      %p66 = pneg %p60
      %p67 = scmp.eq.s32.totalorder %s25, 1
      %p68 = por %p66, %p67
      %p69 = scmp.ne.s32.totalorder %s61, %s64
      %p70 = scmp.eq.s32.totalorder %s25, 0
      %p71 = por %p69, %p70
      %p72 = scmp.ne.s32.totalorder %s61, %s64
      %p73 = scmp.eq.s32.totalorder %s30, 1
      %p74 = por %p72, %p73
      %p75 = scmp.ne.s32.totalorder %s64, %s65
      %p76 = scmp.eq.s32.totalorder %s30, 0
      %p77 = por %p75, %p76
      %p78 = scmp.ne.s32.totalorder %s64, %s65
      %p79 = scmp.eq.s32.totalorder %s31, 1
      %p80 = por %p78, %p79
      %p82 = scmp.ne.s32.totalorder %s65, %s81
      %p83 = scmp.eq.s32.totalorder %s31, 0
      %p84 = por %p82, %p83
      %s86 = sadd.s32 %s85, 1
      %p89 = scmp.eq.s32.totalorder %s25, 1
      %p90 = scmp.ne.s32.totalorder %s85, %s87
      %p91 = scmp.eq.s32.totalorder %s25, 0
      %p92 = por %p90, %p91
      %p93 = scmp.ne.s32.totalorder %s85, %s87
      %p94 = scmp.eq.s32.totalorder %s30, 1
      %p95 = por %p93, %p94
      %p96 = scmp.ne.s32.totalorder %s87, %s88
      %p97 = scmp.eq.s32.totalorder %s30, 0
      %p98 = por %p96, %p97
      %p99 = scmp.ne.s32.totalorder %s87, %s88
      %p100 = scmp.eq.s32.totalorder %s31, 1
      %p101 = por %p99, %p100
      %p103 = scmp.ne.s32.totalorder %s88, %s102
      %p104 = scmp.eq.s32.totalorder %s31, 0
      %p105 = por %p103, %p104
      %s107 = sadd.s32 %s106, 1
      %p110 = scmp.eq.s32.totalorder %s25, 1
      %p111 = scmp.ne.s32.totalorder %s106, %s108
      %p112 = scmp.eq.s32.totalorder %s25, 0
      %p113 = por %p111, %p112
      %p114 = scmp.ne.s32.totalorder %s106, %s108
      %p115 = scmp.eq.s32.totalorder %s30, 1
      %p116 = por %p114, %p115
      %p117 = scmp.ne.s32.totalorder %s108, %s109
      %p118 = scmp.eq.s32.totalorder %s30, 0
      %p119 = por %p117, %p118
      %p120 = scmp.ne.s32.totalorder %s108, %s109
      %p121 = scmp.eq.s32.totalorder %s31, 1
      %p122 = por %p120, %p121
      %p124 = scmp.ne.s32.totalorder %s109, %s123
      %p125 = scmp.eq.s32.totalorder %s31, 0
      %p126 = por %p124, %p125
      %s128 = sadd.s32 %s127, 1
      %p131 = scmp.eq.s32.totalorder %s25, 1
      %p132 = scmp.ne.s32.totalorder %s127, %s129
      %p133 = scmp.eq.s32.totalorder %s25, 0
      %p134 = por %p132, %p133
      %p135 = scmp.ne.s32.totalorder %s127, %s129
      %p136 = scmp.eq.s32.totalorder %s30, 1
      %p137 = por %p135, %p136
      %p138 = scmp.ne.s32.totalorder %s129, %s130
      %p139 = scmp.eq.s32.totalorder %s30, 0
      %p140 = por %p138, %p139
      %p141 = scmp.ne.s32.totalorder %s129, %s130
      %p142 = scmp.eq.s32.totalorder %s31, 1
      %p143 = por %p141, %p142
      %p145 = scmp.ne.s32.totalorder %s130, %s144
      %p146 = scmp.eq.s32.totalorder %s31, 0
      %p147 = por %p145, %p146
      %s149 = sadd.s32 %s148, 1
      %p152 = scmp.eq.s32.totalorder %s25, 1
      %p153 = scmp.ne.s32.totalorder %s148, %s150
      %p154 = scmp.eq.s32.totalorder %s25, 0
      %p155 = por %p153, %p154
      %p156 = scmp.ne.s32.totalorder %s148, %s150
      %p157 = scmp.eq.s32.totalorder %s30, 1
      %p158 = por %p156, %p157
      %p159 = scmp.ne.s32.totalorder %s150, %s151
      %p160 = scmp.eq.s32.totalorder %s30, 0
      %p161 = por %p159, %p160
      %p162 = scmp.ne.s32.totalorder %s150, %s151
      %p163 = scmp.eq.s32.totalorder %s31, 1
      %p164 = por %p162, %p163
      %p166 = scmp.ne.s32.totalorder %s151, %s165
      %p167 = scmp.eq.s32.totalorder %s31, 0
      %p168 = por %p166, %p167
      %s170 = sadd.s32 %s169, 1
      %p173 = scmp.eq.s32.totalorder %s25, 1
      %p174 = scmp.ne.s32.totalorder %s169, %s171
      %p175 = scmp.eq.s32.totalorder %s25, 0
      %p176 = por %p174, %p175
      %p177 = scmp.ne.s32.totalorder %s169, %s171
      %p178 = scmp.eq.s32.totalorder %s30, 1
      %p179 = por %p177, %p178
      %p180 = scmp.ne.s32.totalorder %s171, %s172
      %p181 = scmp.eq.s32.totalorder %s30, 0
      %p182 = por %p180, %p181
      %p183 = scmp.ne.s32.totalorder %s171, %s172
      %p184 = scmp.eq.s32.totalorder %s31, 1
      %p185 = por %p183, %p184
      %p187 = scmp.ne.s32.totalorder %s172, %s186
      %p188 = scmp.eq.s32.totalorder %s31, 0
      %p189 = por %p187, %p188
      %s191 = sadd.s32 %s190, 1
      %p194 = scmp.eq.s32.totalorder %s25, 1
      %p195 = scmp.ne.s32.totalorder %s190, %s192
      %p196 = scmp.eq.s32.totalorder %s25, 0
      %p197 = por %p195, %p196
      %p198 = scmp.ne.s32.totalorder %s190, %s192
      %p199 = scmp.eq.s32.totalorder %s30, 1
      %p200 = por %p198, %p199
      %p201 = scmp.ne.s32.totalorder %s192, %s193
      %p202 = scmp.eq.s32.totalorder %s30, 0
      %p203 = por %p201, %p202
      %p204 = scmp.ne.s32.totalorder %s192, %s193
      %p205 = scmp.eq.s32.totalorder %s31, 1
      %p206 = por %p204, %p205
      %p208 = scmp.ne.s32.totalorder %s193, %s207
      %p209 = scmp.eq.s32.totalorder %s31, 0
      %p210 = por %p208, %p209
      %s212 = sadd.s32 %s211, 1
      %p215 = scmp.eq.s32.totalorder %s25, 1
      %p216 = scmp.ne.s32.totalorder %s211, %s213
      %p217 = scmp.eq.s32.totalorder %s25, 0
      %p218 = por %p216, %p217
      %p219 = scmp.ne.s32.totalorder %s211, %s213
      %p220 = scmp.eq.s32.totalorder %s30, 1
      %p221 = por %p219, %p220
      %p222 = scmp.ne.s32.totalorder %s213, %s214
      %p223 = scmp.eq.s32.totalorder %s30, 0
      %p224 = por %p222, %p223
      %p225 = scmp.ne.s32.totalorder %s213, %s214
      %p226 = scmp.eq.s32.totalorder %s31, 1
      %p227 = por %p225, %p226
      %p229 = scmp.ne.s32.totalorder %s214, %s228
      %p230 = scmp.eq.s32.totalorder %s31, 0
      %p231 = por %p229, %p230
      %s233 = sadd.s32 %s232, 1
      %p236 = scmp.eq.s32.totalorder %s25, 1
      %p237 = scmp.ne.s32.totalorder %s232, %s234
      %p238 = scmp.eq.s32.totalorder %s25, 0
      %p239 = por %p237, %p238
      %p240 = scmp.ne.s32.totalorder %s232, %s234
      %p241 = scmp.eq.s32.totalorder %s30, 1
      %p242 = por %p240, %p241
      %p243 = scmp.ne.s32.totalorder %s234, %s235
      %p244 = scmp.eq.s32.totalorder %s30, 0
      %p245 = por %p243, %p244
      %p246 = scmp.ne.s32.totalorder %s234, %s235
      %p247 = scmp.eq.s32.totalorder %s31, 1
      %p248 = por %p246, %p247
      %p250 = scmp.ne.s32.totalorder %s235, %s249
      %p251 = scmp.eq.s32.totalorder %s31, 0
      %p252 = por %p250, %p251
      %s254 = sadd.s32 %s253, 1
      %p257 = scmp.eq.s32.totalorder %s25, 1
      %p258 = scmp.ne.s32.totalorder %s253, %s255
      %p259 = scmp.eq.s32.totalorder %s25, 0
      %p260 = por %p258, %p259
      %p261 = scmp.ne.s32.totalorder %s253, %s255
      %p262 = scmp.eq.s32.totalorder %s30, 1
      %p263 = por %p261, %p262
      %p264 = scmp.ne.s32.totalorder %s255, %s256
      %p265 = scmp.eq.s32.totalorder %s30, 0
      %p266 = por %p264, %p265
      %p267 = scmp.ne.s32.totalorder %s255, %s256
      %p268 = scmp.eq.s32.totalorder %s31, 1
      %p269 = por %p267, %p268
      %p271 = scmp.ne.s32.totalorder %s256, %s270
      %p272 = scmp.eq.s32.totalorder %s31, 0
      %p273 = por %p271, %p272
      %s275 = sadd.s32 %s274, 1
      %p278 = scmp.eq.s32.totalorder %s25, 1
      %p279 = scmp.ne.s32.totalorder %s274, %s276
      %p280 = scmp.eq.s32.totalorder %s25, 0
      %p281 = por %p279, %p280
      %p282 = scmp.ne.s32.totalorder %s274, %s276
      %p283 = scmp.eq.s32.totalorder %s30, 1
      %p284 = por %p282, %p283
      %p285 = scmp.ne.s32.totalorder %s276, %s277
      %p286 = scmp.eq.s32.totalorder %s30, 0
      %p287 = por %p285, %p286
      %p288 = scmp.ne.s32.totalorder %s276, %s277
      %p289 = scmp.eq.s32.totalorder %s31, 1
      %p290 = por %p288, %p289
      %p292 = scmp.ne.s32.totalorder %s277, %s291
      %p293 = scmp.eq.s32.totalorder %s31, 0
      %p294 = por %p292, %p293
      %s296 = sadd.s32 %s295, 1
      %p299 = scmp.eq.s32.totalorder %s25, 1
      %p300 = scmp.ne.s32.totalorder %s295, %s297
      %p301 = scmp.eq.s32.totalorder %s25, 0
      %p302 = por %p300, %p301
      %p303 = scmp.ne.s32.totalorder %s295, %s297
      %p304 = scmp.eq.s32.totalorder %s30, 1
      %p305 = por %p303, %p304
      %p306 = scmp.ne.s32.totalorder %s297, %s298
      %p307 = scmp.eq.s32.totalorder %s30, 0
      %p308 = por %p306, %p307
      %p309 = scmp.ne.s32.totalorder %s297, %s298
      %p310 = scmp.eq.s32.totalorder %s31, 1
      %p311 = por %p309, %p310
      %p313 = scmp.ne.s32.totalorder %s298, %s312
      %p314 = scmp.eq.s32.totalorder %s31, 0
      %p315 = por %p313, %p314
      %s317 = sadd.s32 %s316, 1
      %p320 = scmp.eq.s32.totalorder %s25, 1
      %p321 = scmp.ne.s32.totalorder %s316, %s318
      %p322 = scmp.eq.s32.totalorder %s25, 0
      %p323 = por %p321, %p322
      %p324 = scmp.ne.s32.totalorder %s316, %s318
      %p325 = scmp.eq.s32.totalorder %s30, 1
      %p326 = por %p324, %p325
      %p327 = scmp.ne.s32.totalorder %s318, %s319
      %p328 = scmp.eq.s32.totalorder %s30, 0
      %p329 = por %p327, %p328
      %p330 = scmp.ne.s32.totalorder %s318, %s319
      %p331 = scmp.eq.s32.totalorder %s31, 1
      %p332 = por %p330, %p331
      %p334 = scmp.ne.s32.totalorder %s319, %s333
      %p335 = scmp.eq.s32.totalorder %s31, 0
      %p336 = por %p334, %p335
      %s337 = ssub.s32 %s25, %s32
      %p338 = scmp.eq.s32.totalorder %s337, 0
      %s340 = sadd.s32 %s339, 1
      %s341 = scalar_select %p338, %s339, %s340
      %p344 = pneg %p338
      %p345 = scmp.eq.s32.totalorder %s25, 1
      %p346 = por %p344, %p345
      %p347 = scmp.ne.s32.totalorder %s339, %s342
      %p348 = scmp.eq.s32.totalorder %s25, 0
      %p349 = por %p347, %p348
      %p350 = scmp.ne.s32.totalorder %s339, %s342
      %p351 = scmp.eq.s32.totalorder %s30, 1
      %p352 = por %p350, %p351
      %p353 = scmp.ne.s32.totalorder %s342, %s343
      %p354 = scmp.eq.s32.totalorder %s30, 0
      %p355 = por %p353, %p354
      %p356 = scmp.ne.s32.totalorder %s342, %s343
      %p357 = scmp.eq.s32.totalorder %s31, 1
      %p358 = por %p356, %p357
      %p360 = scmp.ne.s32.totalorder %s343, %s359
      %p361 = scmp.eq.s32.totalorder %s31, 0
      %p362 = por %p360, %p361
      %p363 = scmp.le.s32.totalorder 1, %s25
      %p364 = scmp.lt.s32.totalorder %s25, 3
      %p365 = pnand %p363, %p364
      %p366 = pneg %p365
      // Predicated region
      $region9: #{tpu_custom_call.1} parent=5 // pred_check
        _
      $region10: #{tpu_custom_call.1} parent=5 // pred_check_branch
        %368 = sbr.rel (%p365) target = $region12
      $region11: #{tpu_custom_call.1} parent=5 // pred_region
        %s369 = ssub.s32 %s25, 1
        // Predicated region
        $region13: #{tpu_custom_call.1} parent=11 // pred_check
          %p370 = pneg %p98
        $region14: #{tpu_custom_call.1} parent=11 // pred_check_branch
          %372 = sbr.rel (%p370) target = $region16
        $region15: #{tpu_custom_call.1} parent=11 // pred_region
          %s374 = ssub.s32 512, 512
          %375 = vsyncadd [#allocation3], %s374
          %s376 = sshll.u32 [#allocation2], 4
          %s377 = int_to_ptr.vmem [resolvable:$true] %s376
          %382 = dma.hbm_to_vmem [thread:$0]  %s2, 512, %s377, [#allocation3], 256, 256, 16
        $region16: #{tpu_custom_call.1} parent=11 // pred_fallthru
          _
        // Predicated region
        $region17: #{tpu_custom_call.1} parent=11 // pred_check
          %p383 = pneg %p119
        $region18: #{tpu_custom_call.1} parent=11 // pred_check_branch
          %385 = sbr.rel (%p383) target = $region20
        $region19: #{tpu_custom_call.1} parent=11 // pred_region
          %s387 = ssub.s32 512, 512
          %388 = vsyncadd [#allocation6], %s387
          %s389 = sshll.u32 [#allocation5], 4
          %s390 = int_to_ptr.vmem [resolvable:$true] %s389
          %395 = dma.hbm_to_vmem [thread:$0]  %s3, 512, %s390, [#allocation6], 256, 256, 16
        $region20: #{tpu_custom_call.1} parent=11 // pred_fallthru
          _
        // Predicated region
        $region21: #{tpu_custom_call.1} parent=11 // pred_check
          %p396 = pneg %p140
        $region22: #{tpu_custom_call.1} parent=11 // pred_check_branch
          %398 = sbr.rel (%p396) target = $region24
        $region23: #{tpu_custom_call.1} parent=11 // pred_region
          _
        $region24: #{tpu_custom_call.1} parent=11 // pred_fallthru
          _
        // Predicated region
        $region25: #{tpu_custom_call.1} parent=11 // pred_check
          %p399 = pneg %p161
        $region26: #{tpu_custom_call.1} parent=11 // pred_check_branch
          %401 = sbr.rel (%p399) target = $region28
        $region27: #{tpu_custom_call.1} parent=11 // pred_region
          _
        $region28: #{tpu_custom_call.1} parent=11 // pred_fallthru
          _
        // Predicated region
        $region29: #{tpu_custom_call.1} parent=11 // pred_check
          %p402 = pneg %p182
        $region30: #{tpu_custom_call.1} parent=11 // pred_check_branch
          %404 = sbr.rel (%p402) target = $region32
        $region31: #{tpu_custom_call.1} parent=11 // pred_region
          _
        $region32: #{tpu_custom_call.1} parent=11 // pred_fallthru
          _
        // Predicated region
        $region33: #{tpu_custom_call.1} parent=11 // pred_check
          %p405 = pneg %p203
        $region34: #{tpu_custom_call.1} parent=11 // pred_check_branch
          %407 = sbr.rel (%p405) target = $region36
        $region35: #{tpu_custom_call.1} parent=11 // pred_region
          _
        $region36: #{tpu_custom_call.1} parent=11 // pred_fallthru
          _
        // Predicated region
        $region37: #{tpu_custom_call.1} parent=11 // pred_check
          %p408 = pneg %p224
        $region38: #{tpu_custom_call.1} parent=11 // pred_check_branch
          %410 = sbr.rel (%p408) target = $region40
        $region39: #{tpu_custom_call.1} parent=11 // pred_region
          _
        $region40: #{tpu_custom_call.1} parent=11 // pred_fallthru
          _
        // Predicated region
        $region41: #{tpu_custom_call.1} parent=11 // pred_check
          %p411 = pneg %p245
        $region42: #{tpu_custom_call.1} parent=11 // pred_check_branch
          %413 = sbr.rel (%p411) target = $region44
        $region43: #{tpu_custom_call.1} parent=11 // pred_region
          _
        $region44: #{tpu_custom_call.1} parent=11 // pred_fallthru
          _
        // Predicated region
        $region45: #{tpu_custom_call.1} parent=11 // pred_check
          %p414 = pneg %p266
        $region46: #{tpu_custom_call.1} parent=11 // pred_check_branch
          %416 = sbr.rel (%p414) target = $region48
        $region47: #{tpu_custom_call.1} parent=11 // pred_region
          _
        $region48: #{tpu_custom_call.1} parent=11 // pred_fallthru
          _
        // Predicated region
        $region49: #{tpu_custom_call.1} parent=11 // pred_check
          %p417 = pneg %p287
        $region50: #{tpu_custom_call.1} parent=11 // pred_check_branch
          %419 = sbr.rel (%p417) target = $region52
        $region51: #{tpu_custom_call.1} parent=11 // pred_region
          _
        $region52: #{tpu_custom_call.1} parent=11 // pred_fallthru
          _
        // Predicated region
        $region53: #{tpu_custom_call.1} parent=11 // pred_check
          %p420 = pneg %p308
        $region54: #{tpu_custom_call.1} parent=11 // pred_check_branch
          %422 = sbr.rel (%p420) target = $region56
        $region55: #{tpu_custom_call.1} parent=11 // pred_region
          _
        $region56: #{tpu_custom_call.1} parent=11 // pred_fallthru
          _
        // Predicated region
        $region57: #{tpu_custom_call.1} parent=11 // pred_check
          %p423 = pneg %p329
        $region58: #{tpu_custom_call.1} parent=11 // pred_check_branch
          %425 = sbr.rel (%p423) target = $region60
        $region59: #{tpu_custom_call.1} parent=11 // pred_region
          _
        $region60: #{tpu_custom_call.1} parent=11 // pred_fallthru
          _
      $region12: #{tpu_custom_call.1} parent=5 // pred_fallthru
        _
      %p426 = scmp.lt.s32.totalorder %s25, 2
      // Predicated region
      $region61: #{tpu_custom_call.1} parent=5 // pred_check
        %p427 = pneg %p426
      $region62: #{tpu_custom_call.1} parent=5 // pred_check_branch
        %429 = sbr.rel (%p427) target = $region64
      $region63: #{tpu_custom_call.1} parent=5 // pred_region
        // Predicated region
        $region65: #{tpu_custom_call.1} parent=63 // pred_check
          %p430 = pneg %p45
        $region66: #{tpu_custom_call.1} parent=63 // pred_check_branch
          %432 = sbr.rel (%p430) target = $region68
        $region67: #{tpu_custom_call.1} parent=63 // pred_region
          %p433 = scmp.lt.s32.totalorder %s25, 1
          %s434 = scalar_select %p433, %s25, 1
          %s435 = smul.addr %s434, 2
          %s436 = smul.addr %s435, 4
          %s437 = scalar_lea.vmem %s0, %s436
        $region68: #{tpu_custom_call.1} parent=63 // pred_fallthru
          _
        // Predicated region
        $region69: #{tpu_custom_call.1} parent=63 // pred_check
          %p438 = pneg %p71
        $region70: #{tpu_custom_call.1} parent=63 // pred_check_branch
          %440 = sbr.rel (%p438) target = $region72
        $region71: #{tpu_custom_call.1} parent=63 // pred_region
          %p441 = scmp.lt.s32.totalorder %s25, 1
          %s442 = scalar_select %p441, %s25, 1
          %s443 = smul.addr %s442, 2
          %s444 = smul.addr %s443, 8
          %s445 = scalar_lea.vmem %s1, %s444
        $region72: #{tpu_custom_call.1} parent=63 // pred_fallthru
          _
      $region64: #{tpu_custom_call.1} parent=5 // pred_fallthru
        _
      %p446 = scmp.le.s32.totalorder 1, %s25
      %p447 = scmp.lt.s32.totalorder %s25, 3
      %p448 = pnand %p446, %p447
      %p449 = pneg %p448
      // Predicated region
      $region73: #{tpu_custom_call.1} parent=5 // pred_check
        _
      $region74: #{tpu_custom_call.1} parent=5 // pred_check_branch
        %451 = sbr.rel (%p448) target = $region76
      $region75: #{tpu_custom_call.1} parent=5 // pred_region
        %s452 = ssub.s32 %s25, 1
        // Predicated region
        $region77: #{tpu_custom_call.1} parent=75 // pred_check
          %p453 = pneg %p98
        $region78: #{tpu_custom_call.1} parent=75 // pred_check_branch
          %455 = sbr.rel (%p453) target = $region80
        $region79: #{tpu_custom_call.1} parent=75 // pred_region
          %456 = dma.done [#allocation3], 512
        $region80: #{tpu_custom_call.1} parent=75 // pred_fallthru
          _
        // Predicated region
        $region81: #{tpu_custom_call.1} parent=75 // pred_check
          %p457 = pneg %p119
        $region82: #{tpu_custom_call.1} parent=75 // pred_check_branch
          %459 = sbr.rel (%p457) target = $region84
        $region83: #{tpu_custom_call.1} parent=75 // pred_region
          %460 = dma.done [#allocation6], 512
        $region84: #{tpu_custom_call.1} parent=75 // pred_fallthru
          _
        %p461 = scmp.lt.s32.totalorder %s30, 1
        %s462 = scalar_select %p461, %s30, 1
        %s463 = smul.addr %s462, 2
        %s464 = smul.addr %s463, 4
        %s465 = scalar_lea.vmem %s0, %s464
        %p466 = pneg %p51
        %p467 = pneg %p48
        %p468 = scmp.lt.s32.totalorder %s30, 1
        %s469 = scalar_select %p468, %s30, 1
        %s470 = smul.addr %s469, 2
        %s471 = smul.addr %s470, 8
        %s472 = scalar_lea.vmem %s1, %s471
        %p473 = pneg %p77
        %p474 = pneg %p74
        %p475 = pneg %p98
        %p476 = pneg %p95
        %p477 = pneg %p119
        %p478 = pneg %p116
        %p479 = pneg %p140
        %p480 = pneg %p137
        %p481 = pneg %p161
        %p482 = pneg %p158
        %p483 = pneg %p182
        %p484 = pneg %p179
        %p485 = pneg %p203
        %p486 = pneg %p200
        %p487 = pneg %p224
        %p488 = pneg %p221
        %p489 = pneg %p245
        %p490 = pneg %p242
        %p491 = pneg %p266
        %p492 = pneg %p263
        %p493 = pneg %p287
        %p494 = pneg %p284
        %p495 = pneg %p308
        %p496 = pneg %p305
        %p497 = pneg %p329
        %p498 = pneg %p326
        %p499 = pneg %p355
        %p500 = pneg %p352
        %s501 = sand.u32 %s342, 1
        %s502 = scalar_lea.sflag [#allocation4], %s501
        %s503 = sand.u32 %s342, 1
        %s504 = smul.addr %s503, 8
        %s505 = scalar_lea.vmem [#allocation7], %s504
        %p506 = scmp.lt.s32.totalorder %s30, 1
        %s507 = scalar_select %p506, %s30, 1
        %s508 = smul.addr %s507, 2
        %s509 = smul.addr %s508, 4
        %s510 = scalar_lea.vmem %s0, %s509
        %p511 = scmp.lt.s32.totalorder %s30, 1
        %s512 = scalar_select %p511, %s30, 1
        %s513 = smul.addr %s512, 2
        %s514 = smul.addr %s513, 8
        %s515 = scalar_lea.vmem %s1, %s514
        %v516 = vld [vmem:[%s510] sm:$0xff]
        %v517 = vld [vmem:[#allocation2] sm:$0xff]
        %v518 = vld [vmem:[#allocation2 + $0x8] sm:$0xff]
        %v519 = vld [vmem:[#allocation2 + $0x10] sm:$0xff]
        %v520 = vld [vmem:[#allocation2 + $0x18] sm:$0xff]
        %v521 = vld [vmem:[#allocation5] sm:$0xff]
        %v522 = vld [vmem:[#allocation5 + $0x8] sm:$0xff]
        %v523 = vld [vmem:[#allocation5 + $0x10] sm:$0xff]
        %v524 = vld [vmem:[#allocation5 + $0x18] sm:$0xff]
        %v526 = vcombine.high %v516, %v516
        %528 = vmatprep.subr.mxu0 0.0
        %529 = vmatpush1.xpose.msra.mxu0 0.0
        %530 = vmatprep.subr.mxu0 0.0
        %531 = vmatpush1.xpose.msra.mxu0 0.0
        %532 = vmatprep.subr.mxu0 0.0
        %533 = vmatpush1.xpose.msra.mxu0 0.0
        %534 = vmatprep.subr.mxu0 0.0
        %535 = vmatpush1.xpose.msra.mxu0 0.0
        %536 = vmatprep.subr.mxu0 0.0
        %537 = vmatpush1.xpose.msra.mxu0 0.0
        %538 = vmatprep.subr.mxu0 0.0
        %539 = vmatpush1.xpose.msra.mxu0 0.0
        %540 = vmatprep.subr.mxu0 0.0
        %541 = vmatpush1.xpose.msra.mxu0 0.0
        %542 = vmatprep.subr.mxu0 0.0
        %543 = vmatpush1.xpose.msra.mxu0 0.0
        %544 = vmatprep.subr.mxu0 0.0
        %545 = vmatpush1.xpose.msra.mxu0 0.0
        %546 = vmatprep.subr.mxu0 0.0
        %547 = vmatpush1.xpose.msra.mxu0 0.0
        %548 = vmatprep.subr.mxu0 0.0
        %549 = vmatpush1.xpose.msra.mxu0 0.0
        %550 = vmatprep.subr.mxu0 0.0
        %551 = vmatpush1.xpose.msra.mxu0 0.0
        %552 = vmatprep.subr.mxu0 0.0
        %553 = vmatpush1.xpose.msra.mxu0 0.0
        %554 = vmatprep.subr.mxu0 0.0
        %555 = vmatpush1.xpose.msra.mxu0 0.0
        %556 = vmatprep.subr.mxu0 %v520
        %557 = vmatpush1.xpose.msra.mxu0 %v519
        %558 = vmatprep.subr.mxu0 %v518
        %559 = vmatpush1.xpose.msra.mxu0 %v517
        %560 = vmatprep.subr.mxu0 0.0
        %561 = vmatpush2.xpose.msra.mxu0 0.0
        %562 = vmatprep.subr.mxu0 0.0
        %563 = vmatpush2.xpose.msra.mxu0 0.0
        %564 = vmatprep.subr.mxu0 0.0
        %565 = vmatpush2.xpose.msra.mxu0 0.0
        %566 = vmatprep.subr.mxu0 0.0
        %567 = vmatpush2.xpose.msra.mxu0 0.0
        %568 = vmatprep.subr.mxu0 0.0
        %569 = vmatpush2.xpose.msra.mxu0 0.0
        %570 = vmatprep.subr.mxu0 0.0
        %571 = vmatpush2.xpose.msra.mxu0 0.0
        %572 = vmatprep.subr.mxu0 0.0
        %573 = vmatpush2.xpose.msra.mxu0 0.0
        %574 = vmatprep.subr.mxu0 0.0
        %575 = vmatpush2.xpose.msra.mxu0 0.0
        %576 = vmatprep.subr.mxu0 0.0
        %577 = vmatpush2.xpose.msra.mxu0 0.0
        %578 = vmatprep.subr.mxu0 0.0
        %579 = vmatpush2.xpose.msra.mxu0 0.0
        %580 = vmatprep.subr.mxu0 0.0
        %581 = vmatpush2.xpose.msra.mxu0 0.0
        %582 = vmatprep.subr.mxu0 0.0
        %583 = vmatpush2.xpose.msra.mxu0 0.0
        %584 = vmatprep.subr.mxu0 0.0
        %585 = vmatpush2.xpose.msra.mxu0 0.0
        %586 = vmatprep.subr.mxu0 0.0
        %587 = vmatpush2.xpose.msra.mxu0 0.0
        %588 = vmatprep.subr.mxu0 0.0
        %589 = vmatpush2.xpose.msra.mxu0 0.0
        %590 = vmatprep.subr.mxu0 0.0
        %591 = vmatpush2.xpose.msra.mxu0 0.0
        %592 = vmatprep.mubr.f32.mxu0 %v526
        %593 = vmatmul.mubr.f32.gmra.mxu0 %v516
        %v594 = vpop.f32.mrf.mxu0
        %v595 = vadd.f32 0.0, %v594
        %v596 = vpop.f32.mrf.mxu0
        %597 = vdwg.mxu0
        %598 = vmatprep.subr.mxu0 0.0
        %599 = vmatpush1.xpose.msra.mxu0 0.0
        %600 = vmatprep.subr.mxu0 0.0
        %601 = vmatpush1.xpose.msra.mxu0 0.0
        %602 = vmatprep.subr.mxu0 0.0
        %603 = vmatpush1.xpose.msra.mxu0 0.0
        %604 = vmatprep.subr.mxu0 0.0
        %605 = vmatpush1.xpose.msra.mxu0 0.0
        %606 = vmatprep.subr.mxu0 0.0
        %607 = vmatpush1.xpose.msra.mxu0 0.0
        %608 = vmatprep.subr.mxu0 0.0
        %609 = vmatpush1.xpose.msra.mxu0 0.0
        %610 = vmatprep.subr.mxu0 0.0
        %611 = vmatpush1.xpose.msra.mxu0 0.0
        %612 = vmatprep.subr.mxu0 0.0
        %613 = vmatpush1.xpose.msra.mxu0 0.0
        %614 = vmatprep.subr.mxu0 0.0
        %615 = vmatpush1.xpose.msra.mxu0 0.0
        %616 = vmatprep.subr.mxu0 0.0
        %617 = vmatpush1.xpose.msra.mxu0 0.0
        %618 = vmatprep.subr.mxu0 0.0
        %619 = vmatpush1.xpose.msra.mxu0 0.0
        %620 = vmatprep.subr.mxu0 0.0
        %621 = vmatpush1.xpose.msra.mxu0 0.0
        %622 = vmatprep.subr.mxu0 0.0
        %623 = vmatpush1.xpose.msra.mxu0 0.0
        %624 = vmatprep.subr.mxu0 0.0
        %625 = vmatpush1.xpose.msra.mxu0 0.0
        %626 = vmatprep.subr.mxu0 %v524
        %627 = vmatpush1.xpose.msra.mxu0 %v523
        %628 = vmatprep.subr.mxu0 %v522
        %629 = vmatpush1.xpose.msra.mxu0 %v521
        %630 = vmatprep.subr.mxu0 0.0
        %631 = vmatpush2.xpose.msra.mxu0 0.0
        %632 = vmatprep.subr.mxu0 0.0
        %633 = vmatpush2.xpose.msra.mxu0 0.0
        %634 = vmatprep.subr.mxu0 0.0
        %635 = vmatpush2.xpose.msra.mxu0 0.0
        %636 = vmatprep.subr.mxu0 0.0
        %637 = vmatpush2.xpose.msra.mxu0 0.0
        %638 = vmatprep.subr.mxu0 0.0
        %639 = vmatpush2.xpose.msra.mxu0 0.0
        %640 = vmatprep.subr.mxu0 0.0
        %641 = vmatpush2.xpose.msra.mxu0 0.0
        %642 = vmatprep.subr.mxu0 0.0
        %643 = vmatpush2.xpose.msra.mxu0 0.0
        %644 = vmatprep.subr.mxu0 0.0
        %645 = vmatpush2.xpose.msra.mxu0 0.0
        %646 = vmatprep.subr.mxu0 0.0
        %647 = vmatpush2.xpose.msra.mxu0 0.0
        %648 = vmatprep.subr.mxu0 0.0
        %649 = vmatpush2.xpose.msra.mxu0 0.0
        %650 = vmatprep.subr.mxu0 0.0
        %651 = vmatpush2.xpose.msra.mxu0 0.0
        %652 = vmatprep.subr.mxu0 0.0
        %653 = vmatpush2.xpose.msra.mxu0 0.0
        %654 = vmatprep.subr.mxu0 0.0
        %655 = vmatpush2.xpose.msra.mxu0 0.0
        %656 = vmatprep.subr.mxu0 0.0
        %657 = vmatpush2.xpose.msra.mxu0 0.0
        %658 = vmatprep.subr.mxu0 0.0
        %659 = vmatpush2.xpose.msra.mxu0 0.0
        %660 = vmatprep.subr.mxu0 0.0
        %661 = vmatpush2.xpose.msra.mxu0 0.0
        %662 = vmatprep.mubr.f32.mxu0 %v526
        %663 = vmatmul.mubr.f32.gmra.mxu0 %v516
        %v664 = vpop.f32.mrf.mxu0
        %v665 = vadd.f32 0.0, %v664
        %v666 = vpop.f32.mrf.mxu0
        %667 = vdwg.mxu0
        %v668 = vld [vmem:[%s515] sm:$0xff]
        %v669 = vld [vmem:[%s515 + $0x8] sm:$0xff]
        %v670 = vld [vmem:[%s4] sm:$0xff]
        %v671 = vld [vmem:[%s5] sm:$0xff]
        %v672 = vld [vmem:[%s6] sm:$0xff]
        %v673 = vld [vmem:[%s7] sm:$0xff]
        %v674 = vld [vmem:[%s8] sm:$0xff]
        %v675 = vld [vmem:[%s9] sm:$0xff]
        %v676 = vld [vmem:[%s10] sm:$0xf]
        %v677 = vld [vmem:[%s11] sm:$0xf]
        %v678 = vld [vmem:[%s12] sm:$0xf]
        %v679 = vld [vmem:[%s13] sm:$0xf]
        %vm680 = vcmask 130048
        %v682 = vsel %vm680, %v671, 0
        %v685 = vsel %vm680, %v668, 0
        %v688 = vsel %vm680, %v669, 0
        %690 = vmatprep.subr.mxu0 0.0
        %691 = vmatpush1.xpose.msra.mxu0 0.0
        %692 = vmatprep.subr.mxu0 0.0
        %693 = vmatpush1.xpose.msra.mxu0 0.0
        %694 = vmatprep.subr.mxu0 0.0
        %695 = vmatpush1.xpose.msra.mxu0 0.0
        %696 = vmatprep.subr.mxu0 0.0
        %697 = vmatpush1.xpose.msra.mxu0 0.0
        %698 = vmatprep.subr.mxu0 0.0
        %699 = vmatpush1.xpose.msra.mxu0 0.0
        %700 = vmatprep.subr.mxu0 0.0
        %701 = vmatpush1.xpose.msra.mxu0 0.0
        %702 = vmatprep.subr.mxu0 0.0
        %703 = vmatpush1.xpose.msra.mxu0 0.0
        %704 = vmatprep.subr.mxu0 0.0
        %705 = vmatpush1.xpose.msra.mxu0 0.0
        %706 = vmatprep.subr.mxu0 0.0
        %707 = vmatpush1.xpose.msra.mxu0 0.0
        %708 = vmatprep.subr.mxu0 0.0
        %709 = vmatpush1.xpose.msra.mxu0 0.0
        %710 = vmatprep.subr.mxu0 0.0
        %711 = vmatpush1.xpose.msra.mxu0 0.0
        %712 = vmatprep.subr.mxu0 0.0
        %713 = vmatpush1.xpose.msra.mxu0 0.0
        %714 = vmatprep.subr.mxu0 0.0
        %715 = vmatpush1.xpose.msra.mxu0 0.0
        %716 = vmatprep.subr.mxu0 0.0
        %717 = vmatpush1.xpose.msra.mxu0 0.0
        %718 = vmatprep.subr.mxu0 0.0
        %719 = vmatpush1.xpose.msra.mxu0 %v688
        %720 = vmatprep.subr.mxu0 0.0
        %721 = vmatpush1.xpose.msra.mxu0 %v685
        %722 = vmatprep.subr.mxu0 0.0
        %723 = vmatpush2.xpose.msra.mxu0 0.0
        %724 = vmatprep.subr.mxu0 0.0
        %725 = vmatpush2.xpose.msra.mxu0 0.0
        %726 = vmatprep.subr.mxu0 0.0
        %727 = vmatpush2.xpose.msra.mxu0 0.0
        %728 = vmatprep.subr.mxu0 0.0
        %729 = vmatpush2.xpose.msra.mxu0 0.0
        %730 = vmatprep.subr.mxu0 0.0
        %731 = vmatpush2.xpose.msra.mxu0 0.0
        %732 = vmatprep.subr.mxu0 0.0
        %733 = vmatpush2.xpose.msra.mxu0 0.0
        %734 = vmatprep.subr.mxu0 0.0
        %735 = vmatpush2.xpose.msra.mxu0 0.0
        %736 = vmatprep.subr.mxu0 0.0
        %737 = vmatpush2.xpose.msra.mxu0 0.0
        %738 = vmatprep.subr.mxu0 0.0
        %739 = vmatpush2.xpose.msra.mxu0 0.0
        %740 = vmatprep.subr.mxu0 0.0
        %741 = vmatpush2.xpose.msra.mxu0 0.0
        %742 = vmatprep.subr.mxu0 0.0
        %743 = vmatpush2.xpose.msra.mxu0 0.0
        %744 = vmatprep.subr.mxu0 0.0
        %745 = vmatpush2.xpose.msra.mxu0 0.0
        %746 = vmatprep.subr.mxu0 0.0
        %747 = vmatpush2.xpose.msra.mxu0 0.0
        %748 = vmatprep.subr.mxu0 0.0
        %749 = vmatpush2.xpose.msra.mxu0 0.0
        %750 = vmatprep.subr.mxu0 0.0
        %751 = vmatpush2.xpose.msra.mxu0 0.0
        %752 = vmatprep.subr.mxu0 0.0
        %753 = vmatpush2.xpose.msra.mxu0 0.0
        %754 = vmatprep.mubr.f32.mxu0 0.0
        %755 = vmatmul.mubr.f32.gmra.mxu0 %v682
        %v756 = vpop.f32.mrf.mxu0
        %v757 = vadd.f32 0.0, %v756
        %v758 = vpop.f32.mrf.mxu0
        %759 = vdwg.mxu0
        %vm760 = vcmask 31744
        %v762 = vsel %vm760, %v670, 0
        %vm764 = vcmask 1043456
        %v766 = vsel %vm764, %v595, 0
        %768 = vmatprep.subr.mxu0 0.0
        %769 = vmatpush1.msra.mxu0 0.0
        %770 = vmatprep.subr.mxu0 0.0
        %771 = vmatpush1.msra.mxu0 0.0
        %772 = vmatprep.subr.mxu0 0.0
        %773 = vmatpush1.msra.mxu0 0.0
        %774 = vmatprep.subr.mxu0 0.0
        %775 = vmatpush1.msra.mxu0 0.0
        %776 = vmatprep.subr.mxu0 0.0
        %777 = vmatpush1.msra.mxu0 0.0
        %778 = vmatprep.subr.mxu0 0.0
        %779 = vmatpush1.msra.mxu0 0.0
        %780 = vmatprep.subr.mxu0 0.0
        %781 = vmatpush1.msra.mxu0 0.0
        %782 = vmatprep.subr.mxu0 0.0
        %783 = vmatpush1.msra.mxu0 0.0
        %784 = vmatprep.subr.mxu0 0.0
        %785 = vmatpush1.msra.mxu0 0.0
        %786 = vmatprep.subr.mxu0 0.0
        %787 = vmatpush1.msra.mxu0 0.0
        %788 = vmatprep.subr.mxu0 0.0
        %789 = vmatpush1.msra.mxu0 0.0
        %790 = vmatprep.subr.mxu0 0.0
        %791 = vmatpush1.msra.mxu0 0.0
        %792 = vmatprep.subr.mxu0 0.0
        %793 = vmatpush1.msra.mxu0 0.0
        %794 = vmatprep.subr.mxu0 0.0
        %795 = vmatpush1.msra.mxu0 0.0
        %796 = vmatprep.subr.mxu0 0.0
        %797 = vmatpush1.msra.mxu0 0.0
        %798 = vmatprep.subr.mxu0 0.0
        %799 = vmatpush1.msra.mxu0 %v766
        %800 = vmatprep.subr.mxu0 0.0
        %801 = vmatpush2.msra.mxu0 0.0
        %802 = vmatprep.subr.mxu0 0.0
        %803 = vmatpush2.msra.mxu0 0.0
        %804 = vmatprep.subr.mxu0 0.0
        %805 = vmatpush2.msra.mxu0 0.0
        %806 = vmatprep.subr.mxu0 0.0
        %807 = vmatpush2.msra.mxu0 0.0
        %808 = vmatprep.subr.mxu0 0.0
        %809 = vmatpush2.msra.mxu0 0.0
        %810 = vmatprep.subr.mxu0 0.0
        %811 = vmatpush2.msra.mxu0 0.0
        %812 = vmatprep.subr.mxu0 0.0
        %813 = vmatpush2.msra.mxu0 0.0
        %814 = vmatprep.subr.mxu0 0.0
        %815 = vmatpush2.msra.mxu0 0.0
        %816 = vmatprep.subr.mxu0 0.0
        %817 = vmatpush2.msra.mxu0 0.0
        %818 = vmatprep.subr.mxu0 0.0
        %819 = vmatpush2.msra.mxu0 0.0
        %820 = vmatprep.subr.mxu0 0.0
        %821 = vmatpush2.msra.mxu0 0.0
        %822 = vmatprep.subr.mxu0 0.0
        %823 = vmatpush2.msra.mxu0 0.0
        %824 = vmatprep.subr.mxu0 0.0
        %825 = vmatpush2.msra.mxu0 0.0
        %826 = vmatprep.subr.mxu0 0.0
        %827 = vmatpush2.msra.mxu0 0.0
        %828 = vmatprep.subr.mxu0 0.0
        %829 = vmatpush2.msra.mxu0 0.0
        %830 = vmatprep.subr.mxu0 0.0
        %831 = vmatpush2.msra.mxu0 0.0
        %832 = vmatprep.mubr.f32.mxu0 0.0
        %833 = vmatmul.mubr.f32.gmra.mxu0 %v762
        %v834 = vpop.f32.mrf.mxu0
        %v835 = vadd.f32 %v757, %v834
        %v836 = vpop.f32.mrf.mxu0
        %837 = vdwg.mxu0
        %839 = vset.pattern.permute.xlu0 0
        %840 = vperm.xlu0 %839, %v672
        %v841 = vpop.permute.xlu0 %840
        %v843 = vadd.f32 %v835, %v841
        %v844 = vadd.f32 %v843, 3.0
        %v845 = vmax.f32 %v844, 0.0
        %v846 = vmin.f32 %v845, 6.0
        %v847 = vmul.f32 %v846, 0.16666667
        %v848 = vmul.f32 %v843, %v847
        %v850 = vsel %vm680, %v674, 0
        %852 = vmatprep.subr.mxu0 0.0
        %853 = vmatpush1.msra.mxu0 0.0
        %854 = vmatprep.subr.mxu0 0.0
        %855 = vmatpush1.msra.mxu0 0.0
        %856 = vmatprep.subr.mxu0 0.0
        %857 = vmatpush1.msra.mxu0 0.0
        %858 = vmatprep.subr.mxu0 0.0
        %859 = vmatpush1.msra.mxu0 0.0
        %860 = vmatprep.subr.mxu0 0.0
        %861 = vmatpush1.msra.mxu0 0.0
        %862 = vmatprep.subr.mxu0 0.0
        %863 = vmatpush1.msra.mxu0 0.0
        %864 = vmatprep.subr.mxu0 0.0
        %865 = vmatpush1.msra.mxu0 0.0
        %866 = vmatprep.subr.mxu0 0.0
        %867 = vmatpush1.msra.mxu0 0.0
        %868 = vmatprep.subr.mxu0 0.0
        %869 = vmatpush1.msra.mxu0 0.0
        %870 = vmatprep.subr.mxu0 0.0
        %871 = vmatpush1.msra.mxu0 0.0
        %872 = vmatprep.subr.mxu0 0.0
        %873 = vmatpush1.msra.mxu0 0.0
        %874 = vmatprep.subr.mxu0 0.0
        %875 = vmatpush1.msra.mxu0 0.0
        %876 = vmatprep.subr.mxu0 0.0
        %877 = vmatpush1.msra.mxu0 0.0
        %878 = vmatprep.subr.mxu0 0.0
        %879 = vmatpush1.msra.mxu0 0.0
        %880 = vmatprep.subr.mxu0 0.0
        %881 = vmatpush1.msra.mxu0 %v669
        %882 = vmatprep.subr.mxu0 0.0
        %883 = vmatpush1.msra.mxu0 %v668
        %884 = vmatprep.subr.mxu0 0.0
        %885 = vmatpush2.msra.mxu0 0.0
        %886 = vmatprep.subr.mxu0 0.0
        %887 = vmatpush2.msra.mxu0 0.0
        %888 = vmatprep.subr.mxu0 0.0
        %889 = vmatpush2.msra.mxu0 0.0
        %890 = vmatprep.subr.mxu0 0.0
        %891 = vmatpush2.msra.mxu0 0.0
        %892 = vmatprep.subr.mxu0 0.0
        %893 = vmatpush2.msra.mxu0 0.0
        %894 = vmatprep.subr.mxu0 0.0
        %895 = vmatpush2.msra.mxu0 0.0
        %896 = vmatprep.subr.mxu0 0.0
        %897 = vmatpush2.msra.mxu0 0.0
        %898 = vmatprep.subr.mxu0 0.0
        %899 = vmatpush2.msra.mxu0 0.0
        %900 = vmatprep.subr.mxu0 0.0
        %901 = vmatpush2.msra.mxu0 0.0
        %902 = vmatprep.subr.mxu0 0.0
        %903 = vmatpush2.msra.mxu0 0.0
        %904 = vmatprep.subr.mxu0 0.0
        %905 = vmatpush2.msra.mxu0 0.0
        %906 = vmatprep.subr.mxu0 0.0
        %907 = vmatpush2.msra.mxu0 0.0
        %908 = vmatprep.subr.mxu0 0.0
        %909 = vmatpush2.msra.mxu0 0.0
        %910 = vmatprep.subr.mxu0 0.0
        %911 = vmatpush2.msra.mxu0 0.0
        %912 = vmatprep.subr.mxu0 0.0
        %913 = vmatpush2.msra.mxu0 0.0
        %914 = vmatprep.subr.mxu0 0.0
        %915 = vmatpush2.msra.mxu0 0.0
        %916 = vmatprep.mubr.f32.mxu0 0.0
        %917 = vmatmul.mubr.f32.gmra.mxu0 %v850
        %v918 = vpop.f32.mrf.mxu0
        %v919 = vadd.f32 0.0, %v918
        %v920 = vpop.f32.mrf.mxu0
        %921 = vdwg.mxu0
        %v923 = vsel %vm760, %v673, 0
        %v926 = vsel %vm764, %v665, 0
        %928 = vmatprep.subr.mxu0 0.0
        %929 = vmatpush1.msra.mxu0 0.0
        %930 = vmatprep.subr.mxu0 0.0
        %931 = vmatpush1.msra.mxu0 0.0
        %932 = vmatprep.subr.mxu0 0.0
        %933 = vmatpush1.msra.mxu0 0.0
        %934 = vmatprep.subr.mxu0 0.0
        %935 = vmatpush1.msra.mxu0 0.0
        %936 = vmatprep.subr.mxu0 0.0
        %937 = vmatpush1.msra.mxu0 0.0
        %938 = vmatprep.subr.mxu0 0.0
        %939 = vmatpush1.msra.mxu0 0.0
        %940 = vmatprep.subr.mxu0 0.0
        %941 = vmatpush1.msra.mxu0 0.0
        %942 = vmatprep.subr.mxu0 0.0
        %943 = vmatpush1.msra.mxu0 0.0
        %944 = vmatprep.subr.mxu0 0.0
        %945 = vmatpush1.msra.mxu0 0.0
        %946 = vmatprep.subr.mxu0 0.0
        %947 = vmatpush1.msra.mxu0 0.0
        %948 = vmatprep.subr.mxu0 0.0
        %949 = vmatpush1.msra.mxu0 0.0
        %950 = vmatprep.subr.mxu0 0.0
        %951 = vmatpush1.msra.mxu0 0.0
        %952 = vmatprep.subr.mxu0 0.0
        %953 = vmatpush1.msra.mxu0 0.0
        %954 = vmatprep.subr.mxu0 0.0
        %955 = vmatpush1.msra.mxu0 0.0
        %956 = vmatprep.subr.mxu0 0.0
        %957 = vmatpush1.msra.mxu0 0.0
        %958 = vmatprep.subr.mxu0 0.0
        %959 = vmatpush1.msra.mxu0 %v926
        %960 = vmatprep.subr.mxu0 0.0
        %961 = vmatpush2.msra.mxu0 0.0
        %962 = vmatprep.subr.mxu0 0.0
        %963 = vmatpush2.msra.mxu0 0.0
        %964 = vmatprep.subr.mxu0 0.0
        %965 = vmatpush2.msra.mxu0 0.0
        %966 = vmatprep.subr.mxu0 0.0
        %967 = vmatpush2.msra.mxu0 0.0
        %968 = vmatprep.subr.mxu0 0.0
        %969 = vmatpush2.msra.mxu0 0.0
        %970 = vmatprep.subr.mxu0 0.0
        %971 = vmatpush2.msra.mxu0 0.0
        %972 = vmatprep.subr.mxu0 0.0
        %973 = vmatpush2.msra.mxu0 0.0
        %974 = vmatprep.subr.mxu0 0.0
        %975 = vmatpush2.msra.mxu0 0.0
        %976 = vmatprep.subr.mxu0 0.0
        %977 = vmatpush2.msra.mxu0 0.0
        %978 = vmatprep.subr.mxu0 0.0
        %979 = vmatpush2.msra.mxu0 0.0
        %980 = vmatprep.subr.mxu0 0.0
        %981 = vmatpush2.msra.mxu0 0.0
        %982 = vmatprep.subr.mxu0 0.0
        %983 = vmatpush2.msra.mxu0 0.0
        %984 = vmatprep.subr.mxu0 0.0
        %985 = vmatpush2.msra.mxu0 0.0
        %986 = vmatprep.subr.mxu0 0.0
        %987 = vmatpush2.msra.mxu0 0.0
        %988 = vmatprep.subr.mxu0 0.0
        %989 = vmatpush2.msra.mxu0 0.0
        %990 = vmatprep.subr.mxu0 0.0
        %991 = vmatpush2.msra.mxu0 0.0
        %992 = vmatprep.mubr.f32.mxu0 0.0
        %993 = vmatmul.mubr.f32.gmra.mxu0 %v923
        %v994 = vpop.f32.mrf.mxu0
        %v995 = vadd.f32 %v919, %v994
        %v996 = vpop.f32.mrf.mxu0
        %997 = vdwg.mxu0
        %999 = vset.pattern.permute.xlu0 0
        %1000 = vperm.xlu0 %999, %v675
        %v1001 = vpop.permute.xlu0 %1000
        %v1003 = vadd.f32 %v995, %v1001
        %v1004 = vadd.f32 %v1003, 3.0
        %v1005 = vmax.f32 %v1004, 0.0
        %v1006 = vmin.f32 %v1005, 6.0
        %v1007 = vmul.f32 %v1006, 0.16666667
        %v1008 = vmul.f32 %v1003, %v1007
        %1010 = vset.pattern.permute.xlu0 0
        %1011 = vperm.xlu0 %1010, %v677
        %v1012 = vpop.permute.xlu0 %1011
        %vm1014 = vcmask 64512
        %v1016 = vsel %vm1014, %v676, 0
        %1018 = vmatprep.subr.mxu0 0.0
        %1019 = vmatpush1.msra.mxu0 0.0
        %1020 = vmatprep.subr.mxu0 0.0
        %1021 = vmatpush1.msra.mxu0 0.0
        %1022 = vmatprep.subr.mxu0 0.0
        %1023 = vmatpush1.msra.mxu0 0.0
        %1024 = vmatprep.subr.mxu0 0.0
        %1025 = vmatpush1.msra.mxu0 0.0
        %1026 = vmatprep.subr.mxu0 0.0
        %1027 = vmatpush1.msra.mxu0 0.0
        %1028 = vmatprep.subr.mxu0 0.0
        %1029 = vmatpush1.msra.mxu0 0.0
        %1030 = vmatprep.subr.mxu0 0.0
        %1031 = vmatpush1.msra.mxu0 0.0
        %1032 = vmatprep.subr.mxu0 0.0
        %1033 = vmatpush1.msra.mxu0 0.0
        %1034 = vmatprep.subr.mxu0 0.0
        %1035 = vmatpush1.msra.mxu0 0.0
        %1036 = vmatprep.subr.mxu0 0.0
        %1037 = vmatpush1.msra.mxu0 0.0
        %1038 = vmatprep.subr.mxu0 0.0
        %1039 = vmatpush1.msra.mxu0 0.0
        %1040 = vmatprep.subr.mxu0 0.0
        %1041 = vmatpush1.msra.mxu0 0.0
        %1042 = vmatprep.subr.mxu0 0.0
        %1043 = vmatpush1.msra.mxu0 0.0
        %1044 = vmatprep.subr.mxu0 0.0
        %1045 = vmatpush1.msra.mxu0 0.0
        %1046 = vmatprep.subr.mxu0 0.0
        %1047 = vmatpush1.msra.mxu0 0.0
        %1048 = vmatprep.subr.mxu0 0.0
        %1049 = vmatpush1.msra.mxu0 %v848
        %1050 = vmatprep.subr.mxu0 0.0
        %1051 = vmatpush2.msra.mxu0 0.0
        %1052 = vmatprep.subr.mxu0 0.0
        %1053 = vmatpush2.msra.mxu0 0.0
        %1054 = vmatprep.subr.mxu0 0.0
        %1055 = vmatpush2.msra.mxu0 0.0
        %1056 = vmatprep.subr.mxu0 0.0
        %1057 = vmatpush2.msra.mxu0 0.0
        %1058 = vmatprep.subr.mxu0 0.0
        %1059 = vmatpush2.msra.mxu0 0.0
        %1060 = vmatprep.subr.mxu0 0.0
        %1061 = vmatpush2.msra.mxu0 0.0
        %1062 = vmatprep.subr.mxu0 0.0
        %1063 = vmatpush2.msra.mxu0 0.0
        %1064 = vmatprep.subr.mxu0 0.0
        %1065 = vmatpush2.msra.mxu0 0.0
        %1066 = vmatprep.subr.mxu0 0.0
        %1067 = vmatpush2.msra.mxu0 0.0
        %1068 = vmatprep.subr.mxu0 0.0
        %1069 = vmatpush2.msra.mxu0 0.0
        %1070 = vmatprep.subr.mxu0 0.0
        %1071 = vmatpush2.msra.mxu0 0.0
        %1072 = vmatprep.subr.mxu0 0.0
        %1073 = vmatpush2.msra.mxu0 0.0
        %1074 = vmatprep.subr.mxu0 0.0
        %1075 = vmatpush2.msra.mxu0 0.0
        %1076 = vmatprep.subr.mxu0 0.0
        %1077 = vmatpush2.msra.mxu0 0.0
        %1078 = vmatprep.subr.mxu0 0.0
        %1079 = vmatpush2.msra.mxu0 0.0
        %1080 = vmatprep.subr.mxu0 0.0
        %1081 = vmatpush2.msra.mxu0 0.0
        %1082 = vmatprep.mubr.f32.mxu0 0.0
        %1083 = vmatmul.mubr.f32.gmra.mxu0 %v1016
        %v1084 = vpop.f32.mrf.mxu0
        %v1085 = vadd.f32 %v1012, %v1084
        %v1086 = vpop.f32.mrf.mxu0
        %1087 = vdwg.mxu0
        %v1088 = vxor.u32 %v1085, 2147483648
        %v1089 = vmul.f32 %v1088, 1.442695
        %v1090 = vpow.pop %v1089
        %v1091 = vadd.f32 %v1090, 1.0
        %v1092 = vrcp.pop %v1091
        %v1093 = vmul.f32 1.0, %v1092
        %1095 = vset.pattern.permute.xlu0 0
        %1096 = vperm.xlu0 %1095, %v679
        %v1097 = vpop.permute.xlu0 %1096
        %v1100 = vsel %vm1014, %v678, 0
        %1102 = vmatprep.subr.mxu0 0.0
        %1103 = vmatpush1.msra.mxu0 0.0
        %1104 = vmatprep.subr.mxu0 0.0
        %1105 = vmatpush1.msra.mxu0 0.0
        %1106 = vmatprep.subr.mxu0 0.0
        %1107 = vmatpush1.msra.mxu0 0.0
        %1108 = vmatprep.subr.mxu0 0.0
        %1109 = vmatpush1.msra.mxu0 0.0
        %1110 = vmatprep.subr.mxu0 0.0
        %1111 = vmatpush1.msra.mxu0 0.0
        %1112 = vmatprep.subr.mxu0 0.0
        %1113 = vmatpush1.msra.mxu0 0.0
        %1114 = vmatprep.subr.mxu0 0.0
        %1115 = vmatpush1.msra.mxu0 0.0
        %1116 = vmatprep.subr.mxu0 0.0
        %1117 = vmatpush1.msra.mxu0 0.0
        %1118 = vmatprep.subr.mxu0 0.0
        %1119 = vmatpush1.msra.mxu0 0.0
        %1120 = vmatprep.subr.mxu0 0.0
        %1121 = vmatpush1.msra.mxu0 0.0
        %1122 = vmatprep.subr.mxu0 0.0
        %1123 = vmatpush1.msra.mxu0 0.0
        %1124 = vmatprep.subr.mxu0 0.0
        %1125 = vmatpush1.msra.mxu0 0.0
        %1126 = vmatprep.subr.mxu0 0.0
        %1127 = vmatpush1.msra.mxu0 0.0
        %1128 = vmatprep.subr.mxu0 0.0
        %1129 = vmatpush1.msra.mxu0 0.0
        %1130 = vmatprep.subr.mxu0 0.0
        %1131 = vmatpush1.msra.mxu0 0.0
        %1132 = vmatprep.subr.mxu0 0.0
        %1133 = vmatpush1.msra.mxu0 %v1008
        %1134 = vmatprep.subr.mxu0 0.0
        %1135 = vmatpush2.msra.mxu0 0.0
        %1136 = vmatprep.subr.mxu0 0.0
        %1137 = vmatpush2.msra.mxu0 0.0
        %1138 = vmatprep.subr.mxu0 0.0
        %1139 = vmatpush2.msra.mxu0 0.0
        %1140 = vmatprep.subr.mxu0 0.0
        %1141 = vmatpush2.msra.mxu0 0.0
        %1142 = vmatprep.subr.mxu0 0.0
        %1143 = vmatpush2.msra.mxu0 0.0
        %1144 = vmatprep.subr.mxu0 0.0
        %1145 = vmatpush2.msra.mxu0 0.0
        %1146 = vmatprep.subr.mxu0 0.0
        %1147 = vmatpush2.msra.mxu0 0.0
        %1148 = vmatprep.subr.mxu0 0.0
        %1149 = vmatpush2.msra.mxu0 0.0
        %1150 = vmatprep.subr.mxu0 0.0
        %1151 = vmatpush2.msra.mxu0 0.0
        %1152 = vmatprep.subr.mxu0 0.0
        %1153 = vmatpush2.msra.mxu0 0.0
        %1154 = vmatprep.subr.mxu0 0.0
        %1155 = vmatpush2.msra.mxu0 0.0
        %1156 = vmatprep.subr.mxu0 0.0
        %1157 = vmatpush2.msra.mxu0 0.0
        %1158 = vmatprep.subr.mxu0 0.0
        %1159 = vmatpush2.msra.mxu0 0.0
        %1160 = vmatprep.subr.mxu0 0.0
        %1161 = vmatpush2.msra.mxu0 0.0
        %1162 = vmatprep.subr.mxu0 0.0
        %1163 = vmatpush2.msra.mxu0 0.0
        %1164 = vmatprep.subr.mxu0 0.0
        %1165 = vmatpush2.msra.mxu0 0.0
        %1166 = vmatprep.mubr.f32.mxu0 0.0
        %1167 = vmatmul.mubr.f32.gmra.mxu0 %v1100
        %v1168 = vpop.f32.mrf.mxu0
        %v1169 = vadd.f32 %v1097, %v1168
        %v1170 = vpop.f32.mrf.mxu0
        %1171 = vdwg.mxu0
        %v1172 = vxor.u32 %v1169, 2147483648
        %v1173 = vmul.f32 %v1172, 1.442695
        %v1174 = vpow.pop %v1173
        %v1175 = vadd.f32 %v1174, 1.0
        %v1176 = vrcp.pop %v1175
        %v1177 = vmul.f32 1.0, %v1176
        %v1179 = vsel %vm680, %v1093, 0
        %1181 = vmatprep.subr.mxu0 0.0
        %1182 = vmatpush1.msra.mxu0 0.0
        %1183 = vmatprep.subr.mxu0 0.0
        %1184 = vmatpush1.msra.mxu0 0.0
        %1185 = vmatprep.subr.mxu0 0.0
        %1186 = vmatpush1.msra.mxu0 0.0
        %1187 = vmatprep.subr.mxu0 0.0
        %1188 = vmatpush1.msra.mxu0 0.0
        %1189 = vmatprep.subr.mxu0 0.0
        %1190 = vmatpush1.msra.mxu0 0.0
        %1191 = vmatprep.subr.mxu0 0.0
        %1192 = vmatpush1.msra.mxu0 0.0
        %1193 = vmatprep.subr.mxu0 0.0
        %1194 = vmatpush1.msra.mxu0 0.0
        %1195 = vmatprep.subr.mxu0 0.0
        %1196 = vmatpush1.msra.mxu0 0.0
        %1197 = vmatprep.subr.mxu0 0.0
        %1198 = vmatpush1.msra.mxu0 0.0
        %1199 = vmatprep.subr.mxu0 0.0
        %1200 = vmatpush1.msra.mxu0 0.0
        %1201 = vmatprep.subr.mxu0 0.0
        %1202 = vmatpush1.msra.mxu0 0.0
        %1203 = vmatprep.subr.mxu0 0.0
        %1204 = vmatpush1.msra.mxu0 0.0
        %1205 = vmatprep.subr.mxu0 0.0
        %1206 = vmatpush1.msra.mxu0 0.0
        %1207 = vmatprep.subr.mxu0 0.0
        %1208 = vmatpush1.msra.mxu0 0.0
        %1209 = vmatprep.subr.mxu0 %v520
        %1210 = vmatpush1.msra.mxu0 %v519
        %1211 = vmatprep.subr.mxu0 %v518
        %1212 = vmatpush1.msra.mxu0 %v517
        %1213 = vmatprep.subr.mxu0 0.0
        %1214 = vmatpush2.msra.mxu0 0.0
        %1215 = vmatprep.subr.mxu0 0.0
        %1216 = vmatpush2.msra.mxu0 0.0
        %1217 = vmatprep.subr.mxu0 0.0
        %1218 = vmatpush2.msra.mxu0 0.0
        %1219 = vmatprep.subr.mxu0 0.0
        %1220 = vmatpush2.msra.mxu0 0.0
        %1221 = vmatprep.subr.mxu0 0.0
        %1222 = vmatpush2.msra.mxu0 0.0
        %1223 = vmatprep.subr.mxu0 0.0
        %1224 = vmatpush2.msra.mxu0 0.0
        %1225 = vmatprep.subr.mxu0 0.0
        %1226 = vmatpush2.msra.mxu0 0.0
        %1227 = vmatprep.subr.mxu0 0.0
        %1228 = vmatpush2.msra.mxu0 0.0
        %1229 = vmatprep.subr.mxu0 0.0
        %1230 = vmatpush2.msra.mxu0 0.0
        %1231 = vmatprep.subr.mxu0 0.0
        %1232 = vmatpush2.msra.mxu0 0.0
        %1233 = vmatprep.subr.mxu0 0.0
        %1234 = vmatpush2.msra.mxu0 0.0
        %1235 = vmatprep.subr.mxu0 0.0
        %1236 = vmatpush2.msra.mxu0 0.0
        %1237 = vmatprep.subr.mxu0 0.0
        %1238 = vmatpush2.msra.mxu0 0.0
        %1239 = vmatprep.subr.mxu0 0.0
        %1240 = vmatpush2.msra.mxu0 0.0
        %1241 = vmatprep.subr.mxu0 0.0
        %1242 = vmatpush2.msra.mxu0 0.0
        %1243 = vmatprep.subr.mxu0 0.0
        %1244 = vmatpush2.msra.mxu0 0.0
        %1245 = vmatprep.mubr.f32.mxu0 0.0
        %1246 = vmatmul.mubr.f32.gmra.mxu0 %v1179
        %v1247 = vpop.f32.mrf.mxu0
        %v1248 = vadd.f32 0.0, %v1247
        %v1249 = vpop.f32.mrf.mxu0
        %v1250 = vadd.f32 0.0, %v1249
        %1251 = vdwg.mxu0
        %v1253 = vsel %vm680, %v1177, 0
        %1255 = vmatprep.subr.mxu0 0.0
        %1256 = vmatpush1.msra.mxu0 0.0
        %1257 = vmatprep.subr.mxu0 0.0
        %1258 = vmatpush1.msra.mxu0 0.0
        %1259 = vmatprep.subr.mxu0 0.0
        %1260 = vmatpush1.msra.mxu0 0.0
        %1261 = vmatprep.subr.mxu0 0.0
        %1262 = vmatpush1.msra.mxu0 0.0
        %1263 = vmatprep.subr.mxu0 0.0
        %1264 = vmatpush1.msra.mxu0 0.0
        %1265 = vmatprep.subr.mxu0 0.0
        %1266 = vmatpush1.msra.mxu0 0.0
        %1267 = vmatprep.subr.mxu0 0.0
        %1268 = vmatpush1.msra.mxu0 0.0
        %1269 = vmatprep.subr.mxu0 0.0
        %1270 = vmatpush1.msra.mxu0 0.0
        %1271 = vmatprep.subr.mxu0 0.0
        %1272 = vmatpush1.msra.mxu0 0.0
        %1273 = vmatprep.subr.mxu0 0.0
        %1274 = vmatpush1.msra.mxu0 0.0
        %1275 = vmatprep.subr.mxu0 0.0
        %1276 = vmatpush1.msra.mxu0 0.0
        %1277 = vmatprep.subr.mxu0 0.0
        %1278 = vmatpush1.msra.mxu0 0.0
        %1279 = vmatprep.subr.mxu0 0.0
        %1280 = vmatpush1.msra.mxu0 0.0
        %1281 = vmatprep.subr.mxu0 0.0
        %1282 = vmatpush1.msra.mxu0 0.0
        %1283 = vmatprep.subr.mxu0 %v524
        %1284 = vmatpush1.msra.mxu0 %v523
        %1285 = vmatprep.subr.mxu0 %v522
        %1286 = vmatpush1.msra.mxu0 %v521
        %1287 = vmatprep.subr.mxu0 0.0
        %1288 = vmatpush2.msra.mxu0 0.0
        %1289 = vmatprep.subr.mxu0 0.0
        %1290 = vmatpush2.msra.mxu0 0.0
        %1291 = vmatprep.subr.mxu0 0.0
        %1292 = vmatpush2.msra.mxu0 0.0
        %1293 = vmatprep.subr.mxu0 0.0
        %1294 = vmatpush2.msra.mxu0 0.0
        %1295 = vmatprep.subr.mxu0 0.0
        %1296 = vmatpush2.msra.mxu0 0.0
        %1297 = vmatprep.subr.mxu0 0.0
        %1298 = vmatpush2.msra.mxu0 0.0
        %1299 = vmatprep.subr.mxu0 0.0
        %1300 = vmatpush2.msra.mxu0 0.0
        %1301 = vmatprep.subr.mxu0 0.0
        %1302 = vmatpush2.msra.mxu0 0.0
        %1303 = vmatprep.subr.mxu0 0.0
        %1304 = vmatpush2.msra.mxu0 0.0
        %1305 = vmatprep.subr.mxu0 0.0
        %1306 = vmatpush2.msra.mxu0 0.0
        %1307 = vmatprep.subr.mxu0 0.0
        %1308 = vmatpush2.msra.mxu0 0.0
        %1309 = vmatprep.subr.mxu0 0.0
        %1310 = vmatpush2.msra.mxu0 0.0
        %1311 = vmatprep.subr.mxu0 0.0
        %1312 = vmatpush2.msra.mxu0 0.0
        %1313 = vmatprep.subr.mxu0 0.0
        %1314 = vmatpush2.msra.mxu0 0.0
        %1315 = vmatprep.subr.mxu0 0.0
        %1316 = vmatpush2.msra.mxu0 0.0
        %1317 = vmatprep.subr.mxu0 0.0
        %1318 = vmatpush2.msra.mxu0 0.0
        %1319 = vmatprep.mubr.f32.mxu0 0.0
        %1320 = vmatmul.mubr.f32.gmra.mxu0 %v1253
        %v1321 = vpop.f32.mrf.mxu0
        %v1322 = vadd.f32 0.0, %v1321
        %v1323 = vpop.f32.mrf.mxu0
        %v1324 = vadd.f32 0.0, %v1323
        %1325 = vdwg.mxu0
        %v1328 = vcombine.low %v1248, %v1250
        %v1330 = vmul.f32 %v516, %v1328
        %v1333 = vcombine.low %v1322, %v1324
        %v1335 = vmul.f32 %v1330, %v1333
        %1336 = vst [vmem:[%s505] sm:$0xff] %v1335
        %s1337 = sand.u32 %s342, 1
        %s1338 = scalar_lea.sflag [#allocation4], %s1337
        %s1339 = sand.u32 %s342, 1
        %s1340 = smul.addr %s1339, 8
        %s1341 = scalar_lea.vmem [#allocation7], %s1340
        // Predicated region
        $region85: #{tpu_custom_call.1} parent=75 // pred_check
          %p1342 = pneg %p352
        $region86: #{tpu_custom_call.1} parent=75 // pred_check_branch
          %1344 = sbr.rel (%p1342) target = $region88
        $region87: #{tpu_custom_call.1} parent=75 // pred_region
          %s1346 = ssub.s32 128, 128
          %1347 = vsyncadd %s1338, %s1346
          %s1348 = smul.addr %s30, 2
          %s1349 = smul.addr %s1348, 64
          %s1350 = scalar_lea.hbm %s14, %s1349
          %s1352 = sshll.u32 %s1341, 4
          %s1353 = int_to_ptr.vmem [resolvable:$true] %s1352
          %1355 = dma.vmem_to_hbm [thread:$0]  %s1353, 128, %s1350, %s1338
        $region88: #{tpu_custom_call.1} parent=75 // pred_fallthru
          _
      $region76: #{tpu_custom_call.1} parent=5 // pred_fallthru
        _
      %p1356 = scmp.le.s32.totalorder 2, %s25
      // Predicated region
      $region89: #{tpu_custom_call.1} parent=5 // pred_check
        %p1357 = pneg %p1356
      $region90: #{tpu_custom_call.1} parent=5 // pred_check_branch
        %1359 = sbr.rel (%p1357) target = $region92
      $region91: #{tpu_custom_call.1} parent=5 // pred_region
        %s1360 = ssub.s32 %s25, 2
        // Predicated region
        $region93: #{tpu_custom_call.1} parent=91 // pred_check
          %p1361 = pneg %p358
        $region94: #{tpu_custom_call.1} parent=91 // pred_check_branch
          %1363 = sbr.rel (%p1361) target = $region96
        $region95: #{tpu_custom_call.1} parent=91 // pred_region
          %s1364 = sand.u32 %s343, 1
          %s1365 = scalar_lea.sflag [#allocation4], %s1364
          %s1366 = sand.u32 %s343, 1
          %s1367 = smul.addr %s1366, 8
          %s1368 = scalar_lea.vmem [#allocation7], %s1367
          %1369 = dma.done %s1365, 128
        $region96: #{tpu_custom_call.1} parent=91 // pred_fallthru
          _
      $region92: #{tpu_custom_call.1} parent=5 // pred_fallthru
        _
    $region6: #{tpu_custom_call.1} parent=1 // loop_footer
      %s29 = sadd.s32 1, %s25
    $region7: #{tpu_custom_call.1} parent=1 // loop_footer_branch
      %24 = sbr.rel target = $region3
    $region8: #{tpu_custom_call.1} parent=1 // loop_exit
      _
    %1370 = vsyncpa [#allocation3], 1
    %s1371 = scalar_lea.sflag [#allocation3], 1
    %1372 = vsyncpa %s1371, 1
    %1373 = vsyncpa [#allocation6], 1
    %1374 = vsyncpa [#allocation4], 1
    %s1375 = scalar_lea.sflag [#allocation4], 1
    %1376 = vsyncpa %s1375, 1

</llo_original>
